<compile_context>
chip_gen: v6e
topology: v6e:2x2x1
jax: 0.10.0
libtpu: 0.0.40
codegen_flags: <defaults>
</compile_context>

<pallas_src>
import functools

import jax
import jax.numpy as jnp
from jax import lax
from jax.experimental import pallas as pl
from jax.experimental.pallas import tpu as pltpu


def _round_up(v, m):
    return ((v + m - 1) // m) * m


# ----------------------------------------------------------------------------
# Single fused kernel: two hetero-GraphConv encoders + Contrast loss.
# No grid: one invocation, everything resident in VMEM.
# ----------------------------------------------------------------------------
def _fused_fwd_kernel(
    p_ref, d_ref, pos_ref,          # packed parameter slab, packed data slab, pos slab
    z_ref, loss_ref,                # [N, 2*Fout] z slab, (1,) SMEM loss
    *, n, f_in, f_hid, f_out, r_pmi, r_emb,
    o_w1, o_w2p, o_w2e, o_pw1, o_pw2, o_b, tau, lam,
):
    f32 = jnp.float32
    r_tot = r_pmi + r_emb

    # ---- unpack data slab: [adj_pmi_cat | adj_emb_cat | x | pad] -------------
    d = d_ref[...]
    adj_pmi = d[:, 0:r_pmi * n]                      # [n, r_pmi*n]
    adj_emb = d[:, r_pmi * n:r_tot * n]              # [n, r_emb*n]
    x = d[:, r_tot * n:r_tot * n + f_in]             # [n, f_in]

    # ---- unpack parameter slab (static, 8-row-aligned offsets) ---------------
    w1_cat = p_ref[o_w1:o_w1 + f_in, 0:r_tot * f_hid]        # [f_in, r_tot*f_hid]
    w2_pmi = p_ref[o_w2p:o_w2p + f_hid, 0:r_pmi * f_out]     # [f_hid, r_pmi*f_out]
    w2_emb = p_ref[o_w2e:o_w2e + f_hid, 0:r_emb * f_out]     # [f_hid, r_emb*f_out]
    pw1 = p_ref[o_pw1:o_pw1 + f_out, 0:f_out]                # [f_out, f_out]
    pw2 = p_ref[o_pw2:o_pw2 + f_out, 0:f_out]                # [f_out, f_out]
    bias = p_ref[o_b:o_b + 8, :]                             # [8, slab_w]
    b1_pmi = bias[0:1, 0:f_hid]
    b1_emb = bias[1:2, 0:f_hid]
    b2_pmi = bias[2:3, 0:f_out]
    b2_emb = bias[3:4, 0:f_out]
    pb1 = bias[4:5, 0:f_out]
    pb2 = bias[5:6, 0:f_out]

    def stack_blocks(m, nblk, width):
        # [n, nblk*width] lane blocks  ->  [nblk*n, width] sublane stack
        return jnp.concatenate(
            [m[:, i * width:(i + 1) * width] for i in range(nblk)], axis=0)

    # ---- layer 1: all relations of both encoders in ONE X @ W1_cat matmul ----
    xw = jnp.dot(x, w1_cat, preferred_element_type=f32)      # [n, r_tot*f_hid]
    xw_pmi = stack_blocks(xw[:, 0:r_pmi * f_hid], r_pmi, f_hid)          # [r_pmi*n, f_hid]
    xw_emb = stack_blocks(xw[:, r_pmi * f_hid:r_tot * f_hid], r_emb, f_hid)
    # relation aggregation as one matmul per encoder: adj_cat @ stacked == sum_r A[r]@XW[r]
    h_pmi = jnp.maximum(jnp.dot(adj_pmi, xw_pmi, preferred_element_type=f32) + b1_pmi, 0.0)
    h_emb = jnp.maximum(jnp.dot(adj_emb, xw_emb, preferred_element_type=f32) + b1_emb, 0.0)

    # ---- layer 2: one weight matmul + one aggregation matmul per encoder -----
    hw_pmi = jnp.dot(h_pmi, w2_pmi, preferred_element_type=f32)          # [n, r_pmi*f_out]
    hw_emb = jnp.dot(h_emb, w2_emb, preferred_element_type=f32)          # [n, r_emb*f_out]
    z_pmi = jnp.dot(adj_pmi, stack_blocks(hw_pmi, r_pmi, f_out),
                    preferred_element_type=f32) + b2_pmi                 # [n, f_out]
    z_emb = jnp.dot(adj_emb, stack_blocks(hw_emb, r_emb, f_out),
                    preferred_element_type=f32) + b2_emb                 # [n, f_out]

    # one lane-denser output slab
    z_ref[...] = jnp.concatenate([z_pmi, z_emb], axis=1)                 # [n, 2*f_out]

    # ---- Contrast: shared Linear-ELU-Linear projection, run once on stacked z
    z_cat = jnp.concatenate([z_pmi, z_emb], axis=0)                      # [2n, f_out]
    h = jnp.dot(z_cat, pw1, preferred_element_type=f32) + pb1
    h = jnp.where(h > 0.0, h, jnp.exp(jnp.minimum(h, 0.0)) - 1.0)        # ELU
    p = jnp.dot(h, pw2, preferred_element_type=f32) + pb2                # [2n, f_out]

    # row-normalize both projections with one rsqrt pass; fold 1/tau into p1
    pn = p * lax.rsqrt(jnp.sum(p * p, axis=-1, keepdims=True))
    p1n = pn[0:n] * (1.0 / tau)
    p2n = pn[n:2 * n]

    # sim = exp(cos(p1, p2) / tau) via NT dot_general (no explicit transpose)
    sim = jnp.exp(
        lax.dot_general(p1n, p2n, (((1,), (1,)), ((), ())),
                        preferred_element_type=f32))                     # [n, n]

    pos = pos_ref[:, 0:n]
    pos_t = pos_ref[:, n:2 * n]

    # mp->sc direction: row-normalize sim, mask by pos; log(den)-log(num) is exact
    row_den = jnp.sum(sim, axis=1, keepdims=True) + 1e-8
    row_num = jnp.sum(sim * pos, axis=1, keepdims=True)
    lori_mp = jnp.log(row_den) - jnp.log(row_num)

    # sc->mp direction via column sums of sim against pos.T (no NxN transpose)
    col_den = jnp.sum(sim, axis=0, keepdims=True) + 1e-8
    col_num = jnp.sum(sim * pos_t, axis=0, keepdims=True)
    lori_sc = jnp.log(col_den) - jnp.log(col_num)

    loss_ref[0] = lam * jnp.mean(lori_mp) + (1.0 - lam) * jnp.mean(lori_sc)


def _cost_estimate(r_pmi, r_emb, n, f_in, f_hid, f_out):
    r_tot = r_pmi + r_emb
    flops = (
        2 * n * f_in * (r_tot * f_hid)                      # X @ W1_cat
        + 2 * n * (r_pmi * n) * f_hid + 2 * n * (r_emb * n) * f_hid   # layer-1 aggregation
        + 2 * n * f_hid * (r_pmi * f_out) + 2 * n * f_hid * (r_emb * f_out)
        + 2 * n * (r_pmi * n) * f_out + 2 * n * (r_emb * n) * f_out   # layer-2 aggregation
        + 2 * (2 * n) * f_out * f_out * 2                   # projection MLP (stacked)
        + 2 * n * n * f_out                                 # sim matmul
        + 12 * n * n                                        # masking / normalization
    )
    transcendentals = 2 * n * f_out + 2 * n + n * n + 4 * n
    slab_w = _round_up(max(r_tot * f_hid, r_pmi * f_out, r_emb * f_out, f_out), 128)
    p_rows = (_round_up(f_in, 8) + 2 * _round_up(f_hid, 8)
              + 2 * _round_up(f_out, 8) + 8)
    d_w = _round_up(r_tot * n + f_in, 128)
    bytes_accessed = 4 * (p_rows * slab_w + n * d_w + n * 2 * n + n * 2 * f_out + 1)
    return pl.CostEstimate(flops=flops, transcendentals=transcendentals,
                           bytes_accessed=bytes_accessed)


# ----------------------------------------------------------------------------
# Wrapper: parameter containers + packing + single fused pallas_call.
# ----------------------------------------------------------------------------
def init_params(key, n_inp, n_hid, n_out, n_rel_pmi, n_rel_emb):
    ks = jax.random.split(key, 6)

    def glorot(k, shape):
        fan_in, fan_out = shape[-2], shape[-1]
        s = jnp.sqrt(6.0 / (fan_in + fan_out))
        return jax.random.uniform(k, shape, jnp.float32, -s, s)

    def encoder(k, n_rel):
        k1, k2 = jax.random.split(k)
        return dict(
            w1=glorot(k1, (n_rel, n_inp, n_hid)),
            b1=jnp.zeros((n_rel, 1, n_hid), jnp.float32),
            w2=glorot(k2, (n_rel, n_hid, n_out)),
            b2=jnp.zeros((n_rel, 1, n_out), jnp.float32),
        )

    return dict(
        pmi=encoder(ks[0], n_rel_pmi),
        emb=encoder(ks[1], n_rel_emb),
        proj_w1=glorot(ks[2], (n_out, n_out)),
        proj_b1=jnp.zeros((1, n_out), jnp.float32),
        proj_w2=glorot(ks[3], (n_out, n_out)),
        proj_b2=jnp.zeros((1, n_out), jnp.float32),
    )


@functools.partial(jax.jit, static_argnames=("tau", "lam"))
def existence_encoder_fwd(params, pos, adj_pmi, adj_emb, node_features, *, tau, lam):
    f32 = jnp.float32
    r_pmi, n, _ = adj_pmi.shape
    r_emb = adj_emb.shape[0]
    f_in = node_features.shape[1]
    f_hid = params["pmi"]["w1"].shape[2]
    f_out = params["pmi"]["w2"].shape[2]
    r_tot = r_pmi + r_emb

    # ----- parameter slab (single DMA): lane-concat weights, 8-aligned rows ---
    w1_cat = jnp.concatenate(
        [params["pmi"]["w1"][r] for r in range(r_pmi)]
        + [params["emb"]["w1"][r] for r in range(r_emb)], axis=1)        # [f_in, r_tot*f_hid]
    w2_pmi_cat = jnp.concatenate([params["pmi"]["w2"][r] for r in range(r_pmi)], axis=1)
    w2_emb_cat = jnp.concatenate([params["emb"]["w2"][r] for r in range(r_emb)], axis=1)
    # biases pre-summed over relations (numerically identical to per-relation adds)
    b1_pmi = jnp.sum(params["pmi"]["b1"], axis=0)[0]
    b1_emb = jnp.sum(params["emb"]["b1"], axis=0)[0]
    b2_pmi = jnp.sum(params["pmi"]["b2"], axis=0)[0]
    b2_emb = jnp.sum(params["emb"]["b2"], axis=0)[0]

    slab_w = _round_up(max(r_tot * f_hid, r_pmi * f_out, r_emb * f_out, f_out), 128)

    def place(a):
        rows = _round_up(a.shape[0], 8)
        return jnp.pad(a.astype(f32),
                       ((0, rows - a.shape[0]), (0, slab_w - a.shape[1])))

    bias_block = jnp.zeros((8, slab_w), f32)
    bias_block = bias_block.at[0, :f_hid].set(b1_pmi)
    bias_block = bias_block.at[1, :f_hid].set(b1_emb)
    bias_block = bias_block.at[2, :f_out].set(b2_pmi)
    bias_block = bias_block.at[3, :f_out].set(b2_emb)
    bias_block = bias_block.at[4, :f_out].set(params["proj_b1"][0])
    bias_block = bias_block.at[5, :f_out].set(params["proj_b2"][0])

    pieces = [w1_cat, w2_pmi_cat, w2_emb_cat, params["proj_w1"], params["proj_w2"]]
    offs, padded, cur = [], [], 0
    for a in pieces:
        offs.append(cur)
        q = place(a)
        padded.append(q)
        cur += q.shape[0]
    o_bias = cur
    padded.append(bias_block)
    p_slab = jnp.concatenate(padded, axis=0)                             # [~232, slab_w]

    # ----- data slab (single DMA): [adj_pmi_cat | adj_emb_cat | x | pad] ------
    d_w = _round_up(r_tot * n + f_in, 128)
    d_slab = jnp.concatenate(
        [adj_pmi[r] for r in range(r_pmi)]
        + [adj_emb[r] for r in range(r_emb)]
        + [node_features.astype(f32)], axis=1)
    d_slab = jnp.pad(d_slab, ((0, 0), (0, d_w - d_slab.shape[1])))

    # ----- pos slab: [pos | pos.T] --------------------------------------------
    pos_slab = jnp.concatenate([pos, pos.T], axis=1).astype(f32)

    kernel = functools.partial(
        _fused_fwd_kernel,
        n=n, f_in=f_in, f_hid=f_hid, f_out=f_out, r_pmi=r_pmi, r_emb=r_emb,
        o_w1=offs[0], o_w2p=offs[1], o_w2e=offs[2], o_pw1=offs[3], o_pw2=offs[4],
        o_b=o_bias, tau=tau, lam=lam)

    vmem = pl.BlockSpec(memory_space=pltpu.MemorySpace.VMEM)
    smem = pl.BlockSpec(memory_space=pltpu.MemorySpace.SMEM)

    z_slab, loss = pl.pallas_call(
        kernel,
        out_shape=(
            jax.ShapeDtypeStruct((n, 2 * f_out), f32),
            jax.ShapeDtypeStruct((1,), f32),
        ),
        in_specs=[vmem, vmem, vmem],
        out_specs=(vmem, smem),
        cost_estimate=_cost_estimate(r_pmi, r_emb, n, f_in, f_hid, f_out),
    )(p_slab, d_slab, pos_slab)

    return z_slab[:, :f_out], z_slab[:, f_out:], loss[0]


# ----------------------------------------------------------------------------
# Pure-JAX reference for verification
# ----------------------------------------------------------------------------
def _ref_forward(params, pos, adj_pmi, adj_emb, x, tau, lam):
    def enc(e, adj, x):
        h = jnp.einsum("rij,jf,rfo->io", adj, x, e["w1"]) + jnp.sum(e["b1"][:, 0], 0)
        h = jnp.maximum(h, 0.0)
        return jnp.einsum("rij,jf,rfo->io", adj, h, e["w2"]) + jnp.sum(e["b2"][:, 0], 0)

    z1 = enc(params["pmi"], adj_pmi, x)
    z2 = enc(params["emb"], adj_emb, x)

    def proj(z):
        h = z @ params["proj_w1"] + params["proj_b1"]
        h = jnp.where(h > 0, h, jnp.exp(h) - 1.0)
        return h @ params["proj_w2"] + params["proj_b2"]

    p1, p2 = proj(z1), proj(z2)
    n1 = jnp.linalg.norm(p1, axis=-1, keepdims=True)
    n2 = jnp.linalg.norm(p2, axis=-1, keepdims=True)
    sim = jnp.exp((p1 @ p2.T) / (n1 * n2.T) / tau)
    mp = sim / (sim.sum(1, keepdims=True) + 1e-8)
    lmp = -jnp.log((mp * pos).sum(-1)).mean()
    st = sim.T
    sc = st / (st.sum(1, keepdims=True) + 1e-8)
    lsc = -jnp.log((sc * pos).sum(-1)).mean()
    return z1, z2, lam * lmp + (1 - lam) * lsc


def _norm_adj(a):
    deg = jnp.clip(a.sum(-1), 1.0, None)
    dinv = 1.0 / jnp.sqrt(deg)
    return a * dinv[..., :, None] * dinv[..., None, :]


if __name__ == "__main__":
    # TODO(synk): DGL sparse heterograph message passing is modeled as dense
    # relation-stacked, symmetrically-normalized adjacency matmuls (exact at this size).
    N, n_inp, n_hid, n_out = 16, 32, 64, 32
    tau, lam = 0.8, 0.5
    R_pmi, R_emb = 2, 3

    key = jax.random.PRNGKey(0)
    k_par, k_x, k_ap, k_ae, k_pos = jax.random.split(key, 5)

    params = init_params(k_par, n_inp, n_hid, n_out, R_pmi, R_emb)
    node_features = jax.random.normal(k_x, (N, n_inp), jnp.float32)

    adj_pmi = _norm_adj(
        (jax.random.uniform(k_ap, (R_pmi, N, N)) > 0.6).astype(jnp.float32))
    adj_emb = _norm_adj(
        (jax.random.uniform(k_ae, (R_emb, N, N)) > 0.6).astype(jnp.float32))

    pos = jnp.clip(
        jnp.eye(N, dtype=jnp.float32)
        + (jax.random.uniform(k_pos, (N, N)) > 0.8).astype(jnp.float32),
        0.0, 1.0)

    z_pmi, z_emb, loss = existence_encoder_fwd(
        params, pos, adj_pmi, adj_emb, node_features, tau=tau, lam=lam)
    jax.block_until_ready((z_pmi, z_emb, loss))

    z1_ref, z2_ref, loss_ref = _ref_forward(
        params, pos, adj_pmi, adj_emb, node_features, tau, lam)

    assert jnp.allclose(z_pmi, z1_ref, rtol=1e-3, atol=1e-3)
    assert jnp.allclose(z_emb, z2_ref, rtol=1e-3, atol=1e-3)
    assert jnp.allclose(loss, loss_ref, rtol=1e-3, atol=1e-3)

    print("KERNEL_OK")
</pallas_src>

<mosaic_0001>
module attributes {stable_mosaic.version = 11 : i64} {
  func.func @_fused_fwd_kernel(%arg0: memref<232x384xf32, #tpu.memory_space<vmem>>, %arg1: memref<16x128xf32, #tpu.memory_space<vmem>>, %arg2: memref<16x32xf32, #tpu.memory_space<vmem>>, %arg3: memref<16x64xf32, #tpu.memory_space<vmem>>, %arg4: memref<1xf32, #tpu.memory_space<smem>>) attributes {dimension_semantics = [], scalar_prefetch = 0 : i64, scratch_operands = 0 : i64, tpu.core_type = #tpu.core_type<tc>} {
    %c0 = arith.constant 0 : index
    %c0_0 = arith.constant 0 : index
    %0 = vector.load %arg1[%c0, %c0_0] : memref<16x128xf32, #tpu.memory_space<vmem>>, vector<16x128xf32>
    %1 = vector.extract_strided_slice %0 {offsets = [0, 0], sizes = [16, 32], strides = [1, 1]} : vector<16x128xf32> to vector<16x32xf32>
    %2 = vector.extract_strided_slice %0 {offsets = [0, 32], sizes = [16, 48], strides = [1, 1]} : vector<16x128xf32> to vector<16x48xf32>
    %3 = vector.extract_strided_slice %0 {offsets = [0, 80], sizes = [16, 32], strides = [1, 1]} : vector<16x128xf32> to vector<16x32xf32>
    %c0_1 = arith.constant 0 : index
    %c0_2 = arith.constant 0 : index
    %4 = vector.load %arg0[%c0_1, %c0_2] : memref<232x384xf32, #tpu.memory_space<vmem>>, vector<32x320xf32>
    %c32 = arith.constant 32 : index
    %c0_3 = arith.constant 0 : index
    %5 = vector.load %arg0[%c32, %c0_3] : memref<232x384xf32, #tpu.memory_space<vmem>>, vector<64x64xf32>
    %c96 = arith.constant 96 : index
    %c0_4 = arith.constant 0 : index
    %6 = vector.load %arg0[%c96, %c0_4] : memref<232x384xf32, #tpu.memory_space<vmem>>, vector<64x96xf32>
    %c160 = arith.constant 160 : index
    %c0_5 = arith.constant 0 : index
    %7 = vector.load %arg0[%c160, %c0_5] : memref<232x384xf32, #tpu.memory_space<vmem>>, vector<32x32xf32>
    %c192 = arith.constant 192 : index
    %c0_6 = arith.constant 0 : index
    %8 = vector.load %arg0[%c192, %c0_6] : memref<232x384xf32, #tpu.memory_space<vmem>>, vector<32x32xf32>
    %c224 = arith.constant 224 : index
    %c0_7 = arith.constant 0 : index
    %9 = vector.load %arg0[%c224, %c0_7] : memref<232x384xf32, #tpu.memory_space<vmem>>, vector<8x384xf32>
    %10 = vector.extract_strided_slice %9 {offsets = [0, 0], sizes = [1, 64], strides = [1, 1]} : vector<8x384xf32> to vector<1x64xf32>
    %11 = vector.extract_strided_slice %9 {offsets = [1, 0], sizes = [1, 64], strides = [1, 1]} : vector<8x384xf32> to vector<1x64xf32>
    %12 = vector.extract_strided_slice %9 {offsets = [2, 0], sizes = [1, 32], strides = [1, 1]} : vector<8x384xf32> to vector<1x32xf32>
    %13 = vector.extract_strided_slice %9 {offsets = [3, 0], sizes = [1, 32], strides = [1, 1]} : vector<8x384xf32> to vector<1x32xf32>
    %14 = vector.extract_strided_slice %9 {offsets = [4, 0], sizes = [1, 32], strides = [1, 1]} : vector<8x384xf32> to vector<1x32xf32>
    %15 = vector.extract_strided_slice %9 {offsets = [5, 0], sizes = [1, 32], strides = [1, 1]} : vector<8x384xf32> to vector<1x32xf32>
    %cst = arith.constant dense<0.000000e+00> : vector<16x320xf32>
    %16 = tpu.matmul %3, %4, %cst {dimension_numbers = #tpu.dot_dimension_numbers<[1], [0], [0], [1], [0, 0, 1, 1], [], []>} : vector<16x32xf32>, vector<32x320xf32>, vector<16x320xf32> -> vector<16x320xf32>
    %17 = vector.extract_strided_slice %16 {offsets = [0, 0], sizes = [16, 128], strides = [1, 1]} : vector<16x320xf32> to vector<16x128xf32>
    %18 = vector.extract_strided_slice %17 {offsets = [0, 0], sizes = [16, 64], strides = [1, 1]} : vector<16x128xf32> to vector<16x64xf32>
    %19 = vector.extract_strided_slice %17 {offsets = [0, 64], sizes = [16, 64], strides = [1, 1]} : vector<16x128xf32> to vector<16x64xf32>
    %20 = tpu.concatenate %18, %19 in 0 : vector<16x64xf32>, vector<16x64xf32> -> vector<32x64xf32>
    %21 = vector.extract_strided_slice %16 {offsets = [0, 128], sizes = [16, 192], strides = [1, 1]} : vector<16x320xf32> to vector<16x192xf32>
    %22 = vector.extract_strided_slice %21 {offsets = [0, 0], sizes = [16, 64], strides = [1, 1]} : vector<16x192xf32> to vector<16x64xf32>
    %23 = vector.extract_strided_slice %21 {offsets = [0, 64], sizes = [16, 64], strides = [1, 1]} : vector<16x192xf32> to vector<16x64xf32>
    %24 = vector.extract_strided_slice %21 {offsets = [0, 128], sizes = [16, 64], strides = [1, 1]} : vector<16x192xf32> to vector<16x64xf32>
    %25 = tpu.concatenate %22, %23, %24 in 0 : vector<16x64xf32>, vector<16x64xf32>, vector<16x64xf32> -> vector<48x64xf32>
    %cst_8 = arith.constant dense<0.000000e+00> : vector<16x64xf32>
    %26 = tpu.matmul %1, %20, %cst_8 {dimension_numbers = #tpu.dot_dimension_numbers<[1], [0], [0], [1], [0, 0, 1, 1], [], []>} : vector<16x32xf32>, vector<32x64xf32>, vector<16x64xf32> -> vector<16x64xf32>
    %27 = vector.broadcast %10 : vector<1x64xf32> to vector<16x64xf32>
    %28 = arith.addf %26, %27 : vector<16x64xf32>
    %cst_9 = arith.constant 0.000000e+00 : f32
    %29 = vector.broadcast %cst_9 : f32 to vector<16x64xf32>
    %30 = arith.maximumf %28, %29 : vector<16x64xf32>
    %cst_10 = arith.constant dense<0.000000e+00> : vector<16x64xf32>
    %31 = tpu.matmul %2, %25, %cst_10 {dimension_numbers = #tpu.dot_dimension_numbers<[1], [0], [0], [1], [0, 0, 1, 1], [], []>} : vector<16x48xf32>, vector<48x64xf32>, vector<16x64xf32> -> vector<16x64xf32>
    %32 = vector.broadcast %11 : vector<1x64xf32> to vector<16x64xf32>
    %33 = arith.addf %31, %32 : vector<16x64xf32>
    %cst_11 = arith.constant 0.000000e+00 : f32
    %34 = vector.broadcast %cst_11 : f32 to vector<16x64xf32>
    %35 = arith.maximumf %33, %34 : vector<16x64xf32>
    %cst_12 = arith.constant dense<0.000000e+00> : vector<16x64xf32>
    %36 = tpu.matmul %30, %5, %cst_12 {dimension_numbers = #tpu.dot_dimension_numbers<[1], [0], [0], [1], [0, 0, 1, 1], [], []>} : vector<16x64xf32>, vector<64x64xf32>, vector<16x64xf32> -> vector<16x64xf32>
    %cst_13 = arith.constant dense<0.000000e+00> : vector<16x96xf32>
    %37 = tpu.matmul %35, %6, %cst_13 {dimension_numbers = #tpu.dot_dimension_numbers<[1], [0], [0], [1], [0, 0, 1, 1], [], []>} : vector<16x64xf32>, vector<64x96xf32>, vector<16x96xf32> -> vector<16x96xf32>
    %38 = vector.extract_strided_slice %36 {offsets = [0, 0], sizes = [16, 32], strides = [1, 1]} : vector<16x64xf32> to vector<16x32xf32>
    %39 = vector.extract_strided_slice %36 {offsets = [0, 32], sizes = [16, 32], strides = [1, 1]} : vector<16x64xf32> to vector<16x32xf32>
    %40 = tpu.concatenate %38, %39 in 0 : vector<16x32xf32>, vector<16x32xf32> -> vector<32x32xf32>
    %cst_14 = arith.constant dense<0.000000e+00> : vector<16x32xf32>
    %41 = tpu.matmul %1, %40, %cst_14 {dimension_numbers = #tpu.dot_dimension_numbers<[1], [0], [0], [1], [0, 0, 1, 1], [], []>} : vector<16x32xf32>, vector<32x32xf32>, vector<16x32xf32> -> vector<16x32xf32>
    %42 = vector.broadcast %12 : vector<1x32xf32> to vector<16x32xf32>
    %43 = arith.addf %41, %42 : vector<16x32xf32>
    %44 = vector.extract_strided_slice %37 {offsets = [0, 0], sizes = [16, 32], strides = [1, 1]} : vector<16x96xf32> to vector<16x32xf32>
    %45 = vector.extract_strided_slice %37 {offsets = [0, 32], sizes = [16, 32], strides = [1, 1]} : vector<16x96xf32> to vector<16x32xf32>
    %46 = vector.extract_strided_slice %37 {offsets = [0, 64], sizes = [16, 32], strides = [1, 1]} : vector<16x96xf32> to vector<16x32xf32>
    %47 = tpu.concatenate %44, %45, %46 in 0 : vector<16x32xf32>, vector<16x32xf32>, vector<16x32xf32> -> vector<48x32xf32>
    %cst_15 = arith.constant dense<0.000000e+00> : vector<16x32xf32>
    %48 = tpu.matmul %2, %47, %cst_15 {dimension_numbers = #tpu.dot_dimension_numbers<[1], [0], [0], [1], [0, 0, 1, 1], [], []>} : vector<16x48xf32>, vector<48x32xf32>, vector<16x32xf32> -> vector<16x32xf32>
    %49 = vector.broadcast %13 : vector<1x32xf32> to vector<16x32xf32>
    %50 = arith.addf %48, %49 : vector<16x32xf32>
    %51 = tpu.concatenate %43, %50 in 1 : vector<16x32xf32>, vector<16x32xf32> -> vector<16x64xf32>
    %c0_16 = arith.constant 0 : index
    %c0_17 = arith.constant 0 : index
    %52 = vector.load %arg3[%c0_16, %c0_17] : memref<16x64xf32, #tpu.memory_space<vmem>>, vector<16x64xf32>
    tpu.vector_store %arg3[%c0_16, %c0_17], %51 {strides = array<i32>} : memref<16x64xf32, #tpu.memory_space<vmem>>, vector<16x64xf32>,
    %53 = tpu.concatenate %43, %50 in 0 : vector<16x32xf32>, vector<16x32xf32> -> vector<32x32xf32>
    %cst_18 = arith.constant dense<0.000000e+00> : vector<32x32xf32>
    %54 = tpu.matmul %53, %7, %cst_18 {dimension_numbers = #tpu.dot_dimension_numbers<[1], [0], [0], [1], [0, 0, 1, 1], [], []>} : vector<32x32xf32>, vector<32x32xf32>, vector<32x32xf32> -> vector<32x32xf32>
    %55 = vector.broadcast %14 : vector<1x32xf32> to vector<32x32xf32>
    %56 = arith.addf %54, %55 : vector<32x32xf32>
    %cst_19 = arith.constant 0.000000e+00 : f32
    %57 = vector.broadcast %cst_19 : f32 to vector<32x32xf32>
    %58 = arith.cmpf ogt, %56, %57 : vector<32x32xf32>
    %cst_20 = arith.constant 0.000000e+00 : f32
    %59 = vector.broadcast %cst_20 : f32 to vector<32x32xf32>
    %60 = arith.minimumf %56, %59 : vector<32x32xf32>
    %61 = math.exp %60 : vector<32x32xf32>
    %cst_21 = arith.constant 1.000000e+00 : f32
    %62 = vector.broadcast %cst_21 : f32 to vector<32x32xf32>
    %63 = arith.subf %61, %62 : vector<32x32xf32>
    %64 = arith.select %58, %56, %63 : vector<32x32xi1>, vector<32x32xf32>
    %cst_22 = arith.constant dense<0.000000e+00> : vector<32x32xf32>
    %65 = tpu.matmul %64, %8, %cst_22 {dimension_numbers = #tpu.dot_dimension_numbers<[1], [0], [0], [1], [0, 0, 1, 1], [], []>} : vector<32x32xf32>, vector<32x32xf32>, vector<32x32xf32> -> vector<32x32xf32>
    %66 = vector.broadcast %15 : vector<1x32xf32> to vector<32x32xf32>
    %67 = arith.addf %65, %66 : vector<32x32xf32>
    %68 = arith.mulf %67, %67 : vector<32x32xf32>
    %cst_23 = arith.constant dense<0.000000e+00> : vector<32xf32>
    %69 = vector.multi_reduction <add>, %68, %cst_23 [1] : vector<32x32xf32> to vector<32xf32>
    %70 = vector.shape_cast %69 : vector<32xf32> to vector<32x1xf32>
    %71 = math.rsqrt %70 : vector<32x1xf32>
    %72 = vector.broadcast %71 : vector<32x1xf32> to vector<32x32xf32>
    %73 = arith.mulf %67, %72 : vector<32x32xf32>
    %74 = vector.extract_strided_slice %73 {offsets = [0, 0], sizes = [16, 32], strides = [1, 1]} : vector<32x32xf32> to vector<16x32xf32>
    %cst_24 = arith.constant 1.250000e+00 : f32
    %75 = vector.broadcast %cst_24 : f32 to vector<16x32xf32>
    %76 = arith.mulf %74, %75 : vector<16x32xf32>
    %77 = vector.extract_strided_slice %73 {offsets = [16, 0], sizes = [16, 32], strides = [1, 1]} : vector<32x32xf32> to vector<16x32xf32>
    %cst_25 = arith.constant dense<0.000000e+00> : vector<16x16xf32>
    %78 = tpu.matmul %76, %77, %cst_25 {dimension_numbers = #tpu.dot_dimension_numbers<[1], [1], [0], [0], [0, 0, 1, 0], [], []>} : vector<16x32xf32>, vector<16x32xf32>, vector<16x16xf32> -> vector<16x16xf32>
    %79 = math.exp %78 : vector<16x16xf32>
    %c0_26 = arith.constant 0 : index
    %c0_27 = arith.constant 0 : index
    %80 = vector.load %arg2[%c0_26, %c0_27] : memref<16x32xf32, #tpu.memory_space<vmem>>, vector<16x16xf32>
    %c0_28 = arith.constant 0 : index
    %c16 = arith.constant 16 : index
    %81 = vector.load %arg2[%c0_28, %c16] : memref<16x32xf32, #tpu.memory_space<vmem>>, vector<16x16xf32>
    %cst_29 = arith.constant dense<0.000000e+00> : vector<16xf32>
    %82 = vector.multi_reduction <add>, %79, %cst_29 [1] : vector<16x16xf32> to vector<16xf32>
    %83 = vector.shape_cast %82 : vector<16xf32> to vector<16x1xf32>
    %cst_30 = arith.constant 9.99999993E-9 : f32
    %84 = vector.broadcast %cst_30 : f32 to vector<16x1xf32>
    %85 = arith.addf %83, %84 : vector<16x1xf32>
    %86 = arith.mulf %79, %80 : vector<16x16xf32>
    %cst_31 = arith.constant dense<0.000000e+00> : vector<16xf32>
    %87 = vector.multi_reduction <add>, %86, %cst_31 [1] : vector<16x16xf32> to vector<16xf32>
    %88 = vector.shape_cast %87 : vector<16xf32> to vector<16x1xf32>
    %89 = math.log %85 : vector<16x1xf32>
    %90 = math.log %88 : vector<16x1xf32>
    %91 = arith.subf %89, %90 : vector<16x1xf32>
    %cst_32 = arith.constant dense<0.000000e+00> : vector<16xf32>
    %92 = vector.multi_reduction <add>, %79, %cst_32 [0] : vector<16x16xf32> to vector<16xf32>
    %93 = vector.shape_cast %92 : vector<16xf32> to vector<1x16xf32>
    %cst_33 = arith.constant 9.99999993E-9 : f32
    %94 = vector.broadcast %cst_33 : f32 to vector<1x16xf32>
    %95 = arith.addf %93, %94 : vector<1x16xf32>
    %96 = arith.mulf %79, %81 : vector<16x16xf32>
    %cst_34 = arith.constant dense<0.000000e+00> : vector<16xf32>
    %97 = vector.multi_reduction <add>, %96, %cst_34 [0] : vector<16x16xf32> to vector<16xf32>
    %98 = vector.shape_cast %97 : vector<16xf32> to vector<1x16xf32>
    %99 = math.log %95 : vector<1x16xf32>
    %100 = math.log %98 : vector<1x16xf32>
    %101 = arith.subf %99, %100 : vector<1x16xf32>
    %102 = vector.shape_cast %91 : vector<16x1xf32> to vector<1x16x1xf32>
    %cst_35 = arith.constant dense<0.000000e+00> : vector<1xf32>
    %103 = vector.multi_reduction <add>, %102, %cst_35 [1, 2] : vector<1x16x1xf32> to vector<1xf32>
    %104 = vector.shape_cast %103 : vector<1xf32> to vector<1x1x1xf32>
    %105 = vector.extract %104[0, 0, 0] : f32 from vector<1x1x1xf32>
    %cst_36 = arith.constant 1.600000e+01 : f32
    %106 = arith.divf %105, %cst_36 : f32
    %cst_37 = arith.constant 5.000000e-01 : f32
    %107 = arith.mulf %cst_37, %106 : f32
    %108 = vector.shape_cast %101 : vector<1x16xf32> to vector<1x1x16xf32>
    %cst_38 = arith.constant dense<0.000000e+00> : vector<1xf32>
    %109 = vector.multi_reduction <add>, %108, %cst_38 [1, 2] : vector<1x1x16xf32> to vector<1xf32>
    %110 = vector.shape_cast %109 : vector<1xf32> to vector<1x1x1xf32>
    %111 = vector.extract %110[0, 0, 0] : f32 from vector<1x1x1xf32>
    %cst_39 = arith.constant 1.600000e+01 : f32
    %112 = arith.divf %111, %cst_39 : f32
    %cst_40 = arith.constant 5.000000e-01 : f32
    %113 = arith.mulf %cst_40, %112 : f32
    %114 = arith.addf %107, %113 : f32
    %c0_41 = arith.constant 0 : index
    %115 = memref.load %arg4[%c0_41] : memref<1xf32, #tpu.memory_space<smem>>
    memref.store %114, %arg4[%c0_41] : memref<1xf32, #tpu.memory_space<smem>>
    return
  }
}

</mosaic_0001>

<llo_original>
// kernel: existence_encoder_fwd.1
$region0: #{existence_encoder_fwd.1}
  #allocation0 [shape = 'u32[]', space=smem, size = 0x4, offset = 0x4, fixed_abs, tag = 'smem constant byte address 0x4 - core index']
  #allocation1 [shape = 'u32[144,128]{1,0:T(1,128)}', space=vmem, size = 0x12000, scoped, tag = 'internal scratch']
  %s0 = inlined_call_operand.vmem [shape: f32[232,384], index: 0, kind: input, shape index: {}]
  %s1 = inlined_call_operand.vmem [shape: f32[16,128], index: 1, kind: input, shape index: {}]
  %s2 = inlined_call_operand.vmem [shape: f32[16,32], index: 2, kind: input, shape index: {}]
  %s3 = inlined_call_operand.vmem [shape: f32[16,64], index: 3, kind: output, shape index: {0}]
  %s4 = inlined_call_operand.hbm [shape: f32[1], index: 4, kind: output, shape index: {1}]
  %5 = xla_tuple %s3, %s4
  %s6 = sld [smem:[#allocation0]]
  $region30: #{existence_encoder_fwd.1} parent=0
    _
  %s8 = ssub.s32 1, %s6
  %s9 = scalar_select 0, %s8, %s6
  $region1: #{existence_encoder_fwd.1} parent=0
    #allocation2 [shape = 'u8[512]{0}', space=smem, size = 0x200, scoped, tag = 'output window, operand 1, single buffered']
    #allocation3 [shape = 's32[1]{0}', space=sflag, size = 0x4, scoped, tag = 'scoped memory for existence_encoder_fwd.1']
    %10 = vsyncpa [#allocation3], 0
    // Predicated region
    $region2: #{existence_encoder_fwd.1} parent=1 // pred_check
      _
    $region3: #{existence_encoder_fwd.1} parent=1 // pred_check_branch
      %12 = sbr.rel (0) target = $region5
    $region4: #{existence_encoder_fwd.1} parent=1 // pred_region
      _
    $region5: #{existence_encoder_fwd.1} parent=1 // pred_fallthru
      _
    // Predicated region
    $region6: #{existence_encoder_fwd.1} parent=1 // pred_check
      _
    $region7: #{existence_encoder_fwd.1} parent=1 // pred_check_branch
      %14 = sbr.rel (0) target = $region9
    $region8: #{existence_encoder_fwd.1} parent=1 // pred_region
      _
    $region9: #{existence_encoder_fwd.1} parent=1 // pred_fallthru
      _
    // Predicated region
    $region10: #{existence_encoder_fwd.1} parent=1 // pred_check
      _
    $region11: #{existence_encoder_fwd.1} parent=1 // pred_check_branch
      %16 = sbr.rel (0) target = $region13
    $region12: #{existence_encoder_fwd.1} parent=1 // pred_region
      _
    $region13: #{existence_encoder_fwd.1} parent=1 // pred_fallthru
      _
    %v17 = vld [vmem:[%s1] sm:$0xff]
    %v18 = vld [vmem:[%s1 + $0x8] sm:$0xff]
    %v19 = vld [vmem:[%s0] sm:$0xff]
    %v20 = vld [vmem:[%s0 + $0x8] sm:$0xff]
    %v21 = vld [vmem:[%s0 + $0x10] sm:$0xff]
    %v22 = vld [vmem:[%s0 + $0x18] sm:$0xff]
    %v23 = vld [vmem:[%s0 + $0x20] sm:$0xff]
    %v24 = vld [vmem:[%s0 + $0x28] sm:$0xff]
    %v25 = vld [vmem:[%s0 + $0x30] sm:$0xff]
    %v26 = vld [vmem:[%s0 + $0x38] sm:$0xff]
    %v27 = vld [vmem:[%s0 + $0x40] sm:$0xff]
    %v28 = vld [vmem:[%s0 + $0x48] sm:$0xff]
    %v29 = vld [vmem:[%s0 + $0x50] sm:$0xff]
    %v30 = vld [vmem:[%s0 + $0x58] sm:$0xff]
    %v31 = vld [vmem:[%s0 + $0x60] sm:$0xff]
    %v32 = vld [vmem:[%s0 + $0x78] sm:$0xff]
    %v33 = vld [vmem:[%s0 + $0x90] sm:$0xff]
    %v34 = vld [vmem:[%s0 + $0xa8] sm:$0xff]
    %v35 = vld [vmem:[%s0 + $0xc0] sm:$0xff]
    %v36 = vld [vmem:[%s0 + $0xd8] sm:$0xff]
    %v37 = vld [vmem:[%s0 + $0xf0] sm:$0xff]
    %v38 = vld [vmem:[%s0 + $0x108] sm:$0xff]
    %v39 = vld [vmem:[%s0 + $0x120] sm:$0xff]
    %v40 = vld [vmem:[%s0 + $0x138] sm:$0xff]
    %v41 = vld [vmem:[%s0 + $0x150] sm:$0xff]
    %v42 = vld [vmem:[%s0 + $0x168] sm:$0xff]
    %v43 = vld [vmem:[%s0 + $0x180] sm:$0xff]
    %v44 = vld [vmem:[%s0 + $0x198] sm:$0xff]
    %v45 = vld [vmem:[%s0 + $0x1b0] sm:$0xff]
    %v46 = vld [vmem:[%s0 + $0x1c8] sm:$0xff]
    %v47 = vld [vmem:[%s0 + $0x1e0] sm:$0xff]
    %v48 = vld [vmem:[%s0 + $0x1f8] sm:$0xff]
    %v49 = vld [vmem:[%s0 + $0x210] sm:$0xff]
    %v50 = vld [vmem:[%s0 + $0x228] sm:$0xff]
    %v51 = vld [vmem:[%s0 + $0x240] sm:$0xff]
    %v52 = vld [vmem:[%s0 + $0x258] sm:$0xff]
    %v53 = vld [vmem:[%s0 + $0x270] sm:$0xff]
    %v54 = vld [vmem:[%s0 + $0x288] sm:$0xff]
    %v55 = vld [vmem:[%s0 + $0x2a0] sm:$0xff]
    %58 = vrot.lane.b32.xlu0 %v17, 48
    %v59 = vpop.permute.xlu0 %58
    %60 = vrot.lane.b32.xlu0 %v18, 48
    %v61 = vpop.permute.xlu0 %60
    %vm62 = vcmask 261120
    %v63 = vsel %vm62, %v59, 0
    %v65 = vsel %vm62, %v61, 0
    %67 = vmatprep.subr.mxu0 0.0
    %68 = vmatpush1.msra.mxu0 0.0
    %69 = vmatprep.subr.mxu0 0.0
    %70 = vmatpush1.msra.mxu0 0.0
    %71 = vmatprep.subr.mxu0 0.0
    %72 = vmatpush1.msra.mxu0 0.0
    %73 = vmatprep.subr.mxu0 0.0
    %74 = vmatpush1.msra.mxu0 0.0
    %75 = vmatprep.subr.mxu0 0.0
    %76 = vmatpush1.msra.mxu0 0.0
    %77 = vmatprep.subr.mxu0 0.0
    %78 = vmatpush1.msra.mxu0 0.0
    %79 = vmatprep.subr.mxu0 0.0
    %80 = vmatpush1.msra.mxu0 0.0
    %81 = vmatprep.subr.mxu0 0.0
    %82 = vmatpush1.msra.mxu0 0.0
    %83 = vmatprep.subr.mxu0 0.0
    %84 = vmatpush1.msra.mxu0 0.0
    %85 = vmatprep.subr.mxu0 0.0
    %86 = vmatpush1.msra.mxu0 0.0
    %87 = vmatprep.subr.mxu0 0.0
    %88 = vmatpush1.msra.mxu0 0.0
    %89 = vmatprep.subr.mxu0 0.0
    %90 = vmatpush1.msra.mxu0 0.0
    %91 = vmatprep.subr.mxu0 %v29
    %92 = vmatpush1.msra.mxu0 %v28
    %93 = vmatprep.subr.mxu0 %v26
    %94 = vmatpush1.msra.mxu0 %v25
    %95 = vmatprep.subr.mxu0 %v23
    %96 = vmatpush1.msra.mxu0 %v22
    %97 = vmatprep.subr.mxu0 %v20
    %98 = vmatpush1.msra.mxu0 %v19
    %99 = vmatprep.subr.mxu0 0.0
    %100 = vmatpush2.msra.mxu0 0.0
    %101 = vmatprep.subr.mxu0 0.0
    %102 = vmatpush2.msra.mxu0 0.0
    %103 = vmatprep.subr.mxu0 0.0
    %104 = vmatpush2.msra.mxu0 0.0
    %105 = vmatprep.subr.mxu0 0.0
    %106 = vmatpush2.msra.mxu0 0.0
    %107 = vmatprep.subr.mxu0 0.0
    %108 = vmatpush2.msra.mxu0 0.0
    %109 = vmatprep.subr.mxu0 0.0
    %110 = vmatpush2.msra.mxu0 0.0
    %111 = vmatprep.subr.mxu0 0.0
    %112 = vmatpush2.msra.mxu0 0.0
    %113 = vmatprep.subr.mxu0 0.0
    %114 = vmatpush2.msra.mxu0 0.0
    %115 = vmatprep.subr.mxu0 0.0
    %116 = vmatpush2.msra.mxu0 0.0
    %117 = vmatprep.subr.mxu0 0.0
    %118 = vmatpush2.msra.mxu0 0.0
    %119 = vmatprep.subr.mxu0 0.0
    %120 = vmatpush2.msra.mxu0 0.0
    %121 = vmatprep.subr.mxu0 0.0
    %122 = vmatpush2.msra.mxu0 0.0
    %123 = vmatprep.subr.mxu0 0.0
    %124 = vmatpush2.msra.mxu0 0.0
    %125 = vmatprep.subr.mxu0 0.0
    %126 = vmatpush2.msra.mxu0 0.0
    %127 = vmatprep.subr.mxu0 0.0
    %128 = vmatpush2.msra.mxu0 0.0
    %129 = vmatprep.subr.mxu0 0.0
    %130 = vmatpush2.msra.mxu0 0.0
    %131 = vmatprep.mubr.f32.mxu0 0.0
    %132 = vmatmul.mubr.f32.gmra.mxu0 %v63
    %v133 = vpop.f32.mrf.mxu0
    %v134 = vadd.f32 0.0, %v133
    %v135 = vpop.f32.mrf.mxu0
    %v136 = vadd.f32 0.0, %v135
    %137 = vmatprep.mubr.f32.mxu0 0.0
    %138 = vmatmul.mubr.f32.gmra.mxu0 %v65
    %v139 = vpop.f32.mrf.mxu0
    %v140 = vadd.f32 0.0, %v139
    %v141 = vpop.f32.mrf.mxu0
    %v142 = vadd.f32 0.0, %v141
    %143 = vdwg.mxu0
    %144 = vmatprep.subr.mxu0 0.0
    %145 = vmatpush1.msra.mxu0 0.0
    %146 = vmatprep.subr.mxu0 0.0
    %147 = vmatpush1.msra.mxu0 0.0
    %148 = vmatprep.subr.mxu0 0.0
    %149 = vmatpush1.msra.mxu0 0.0
    %150 = vmatprep.subr.mxu0 0.0
    %151 = vmatpush1.msra.mxu0 0.0
    %152 = vmatprep.subr.mxu0 0.0
    %153 = vmatpush1.msra.mxu0 0.0
    %154 = vmatprep.subr.mxu0 0.0
    %155 = vmatpush1.msra.mxu0 0.0
    %156 = vmatprep.subr.mxu0 0.0
    %157 = vmatpush1.msra.mxu0 0.0
    %158 = vmatprep.subr.mxu0 0.0
    %159 = vmatpush1.msra.mxu0 0.0
    %160 = vmatprep.subr.mxu0 0.0
    %161 = vmatpush1.msra.mxu0 0.0
    %162 = vmatprep.subr.mxu0 0.0
    %163 = vmatpush1.msra.mxu0 0.0
    %164 = vmatprep.subr.mxu0 0.0
    %165 = vmatpush1.msra.mxu0 0.0
    %166 = vmatprep.subr.mxu0 0.0
    %167 = vmatpush1.msra.mxu0 0.0
    %168 = vmatprep.subr.mxu0 0.0
    %169 = vmatpush1.msra.mxu0 %v30
    %170 = vmatprep.subr.mxu0 0.0
    %171 = vmatpush1.msra.mxu0 %v27
    %172 = vmatprep.subr.mxu0 0.0
    %173 = vmatpush1.msra.mxu0 %v24
    %174 = vmatprep.subr.mxu0 0.0
    %175 = vmatpush1.msra.mxu0 %v21
    %176 = vmatprep.subr.mxu0 0.0
    %177 = vmatpush2.msra.mxu0 0.0
    %178 = vmatprep.subr.mxu0 0.0
    %179 = vmatpush2.msra.mxu0 0.0
    %180 = vmatprep.subr.mxu0 0.0
    %181 = vmatpush2.msra.mxu0 0.0
    %182 = vmatprep.subr.mxu0 0.0
    %183 = vmatpush2.msra.mxu0 0.0
    %184 = vmatprep.subr.mxu0 0.0
    %185 = vmatpush2.msra.mxu0 0.0
    %186 = vmatprep.subr.mxu0 0.0
    %187 = vmatpush2.msra.mxu0 0.0
    %188 = vmatprep.subr.mxu0 0.0
    %189 = vmatpush2.msra.mxu0 0.0
    %190 = vmatprep.subr.mxu0 0.0
    %191 = vmatpush2.msra.mxu0 0.0
    %192 = vmatprep.subr.mxu0 0.0
    %193 = vmatpush2.msra.mxu0 0.0
    %194 = vmatprep.subr.mxu0 0.0
    %195 = vmatpush2.msra.mxu0 0.0
    %196 = vmatprep.subr.mxu0 0.0
    %197 = vmatpush2.msra.mxu0 0.0
    %198 = vmatprep.subr.mxu0 0.0
    %199 = vmatpush2.msra.mxu0 0.0
    %200 = vmatprep.subr.mxu0 0.0
    %201 = vmatpush2.msra.mxu0 0.0
    %202 = vmatprep.subr.mxu0 0.0
    %203 = vmatpush2.msra.mxu0 0.0
    %204 = vmatprep.subr.mxu0 0.0
    %205 = vmatpush2.msra.mxu0 0.0
    %206 = vmatprep.subr.mxu0 0.0
    %207 = vmatpush2.msra.mxu0 0.0
    %208 = vmatprep.mubr.f32.mxu0 0.0
    %209 = vmatmul.mubr.f32.gmra.mxu0 %v63
    %v210 = vpop.f32.mrf.mxu0
    %v211 = vadd.f32 0.0, %v210
    %v212 = vpop.f32.mrf.mxu0
    %213 = vmatprep.mubr.f32.mxu0 0.0
    %214 = vmatmul.mubr.f32.gmra.mxu0 %v65
    %v215 = vpop.f32.mrf.mxu0
    %v216 = vadd.f32 0.0, %v215
    %v217 = vpop.f32.mrf.mxu0
    %218 = vdwg.mxu0
    %221 = vrot.lane.b32.xlu0 %v134, 64
    %v222 = vpop.permute.xlu0 %221
    %223 = vrot.lane.b32.xlu0 %v140, 64
    %v224 = vpop.permute.xlu0 %223
    %229 = vrot.lane.b32.xlu0 %v136, 64
    %v230 = vpop.permute.xlu0 %229
    %231 = vrot.lane.b32.xlu0 %v142, 64
    %v232 = vpop.permute.xlu0 %231
    %v235 = vlaneseq
    %v236 = vshrl.u32 %v235, 7
    %v237 = vsub.s32 0, %v236
    %v238 = vrot.slane %v55, %v237
    %v239 = vsel %vm62, %v17, 0
    %v241 = vsel %vm62, %v18, 0
    %243 = vmatprep.subr.mxu0 0.0
    %244 = vmatpush1.msra.mxu0 0.0
    %245 = vmatprep.subr.mxu0 0.0
    %246 = vmatpush1.msra.mxu0 0.0
    %247 = vmatprep.subr.mxu0 0.0
    %248 = vmatpush1.msra.mxu0 0.0
    %249 = vmatprep.subr.mxu0 0.0
    %250 = vmatpush1.msra.mxu0 0.0
    %251 = vmatprep.subr.mxu0 0.0
    %252 = vmatpush1.msra.mxu0 0.0
    %253 = vmatprep.subr.mxu0 0.0
    %254 = vmatpush1.msra.mxu0 0.0
    %255 = vmatprep.subr.mxu0 0.0
    %256 = vmatpush1.msra.mxu0 0.0
    %257 = vmatprep.subr.mxu0 0.0
    %258 = vmatpush1.msra.mxu0 0.0
    %259 = vmatprep.subr.mxu0 0.0
    %260 = vmatpush1.msra.mxu0 0.0
    %261 = vmatprep.subr.mxu0 0.0
    %262 = vmatpush1.msra.mxu0 0.0
    %263 = vmatprep.subr.mxu0 0.0
    %264 = vmatpush1.msra.mxu0 0.0
    %265 = vmatprep.subr.mxu0 0.0
    %266 = vmatpush1.msra.mxu0 0.0
    %267 = vmatprep.subr.mxu0 0.0
    %268 = vmatpush1.msra.mxu0 %v224
    %269 = vmatprep.subr.mxu0 0.0
    %270 = vmatpush1.msra.mxu0 %v222
    %271 = vmatprep.subr.mxu0 0.0
    %272 = vmatpush1.msra.mxu0 %v140
    %273 = vmatprep.subr.mxu0 0.0
    %274 = vmatpush1.msra.mxu0 %v134
    %275 = vmatprep.subr.mxu0 0.0
    %276 = vmatpush2.msra.mxu0 0.0
    %277 = vmatprep.subr.mxu0 0.0
    %278 = vmatpush2.msra.mxu0 0.0
    %279 = vmatprep.subr.mxu0 0.0
    %280 = vmatpush2.msra.mxu0 0.0
    %281 = vmatprep.subr.mxu0 0.0
    %282 = vmatpush2.msra.mxu0 0.0
    %283 = vmatprep.subr.mxu0 0.0
    %284 = vmatpush2.msra.mxu0 0.0
    %285 = vmatprep.subr.mxu0 0.0
    %286 = vmatpush2.msra.mxu0 0.0
    %287 = vmatprep.subr.mxu0 0.0
    %288 = vmatpush2.msra.mxu0 0.0
    %289 = vmatprep.subr.mxu0 0.0
    %290 = vmatpush2.msra.mxu0 0.0
    %291 = vmatprep.subr.mxu0 0.0
    %292 = vmatpush2.msra.mxu0 0.0
    %293 = vmatprep.subr.mxu0 0.0
    %294 = vmatpush2.msra.mxu0 0.0
    %295 = vmatprep.subr.mxu0 0.0
    %296 = vmatpush2.msra.mxu0 0.0
    %297 = vmatprep.subr.mxu0 0.0
    %298 = vmatpush2.msra.mxu0 0.0
    %299 = vmatprep.subr.mxu0 0.0
    %300 = vmatpush2.msra.mxu0 0.0
    %301 = vmatprep.subr.mxu0 0.0
    %302 = vmatpush2.msra.mxu0 0.0
    %303 = vmatprep.subr.mxu0 0.0
    %304 = vmatpush2.msra.mxu0 0.0
    %305 = vmatprep.subr.mxu0 0.0
    %306 = vmatpush2.msra.mxu0 0.0
    %307 = vmatprep.mubr.f32.mxu0 0.0
    %308 = vmatmul.mubr.f32.gmra.mxu0 %v239
    %v309 = vpop.f32.mrf.mxu0
    %v310 = vadd.f32 %v238, %v309
    %v311 = vpop.f32.mrf.mxu0
    %312 = vmatprep.mubr.f32.mxu0 0.0
    %313 = vmatmul.mubr.f32.gmra.mxu0 %v241
    %v314 = vpop.f32.mrf.mxu0
    %v315 = vadd.f32 %v238, %v314
    %v316 = vpop.f32.mrf.mxu0
    %317 = vdwg.mxu0
    %v318 = vmax.f32 %v310, 0.0
    %v319 = vmax.f32 %v315, 0.0
    %v320 = vlaneseq
    %v321 = vshrl.u32 %v320, 7
    %v322 = vsub.s32 1, %v321
    %v323 = vrot.slane %v55, %v322
    %324 = vrot.lane.b32.xlu0 %v17, 96
    %v325 = vpop.permute.xlu0 %324
    %326 = vrot.lane.b32.xlu0 %v18, 96
    %v327 = vpop.permute.xlu0 %326
    %vm328 = vcmask 392192
    %v329 = vsel %vm328, %v325, 0
    %v331 = vsel %vm328, %v327, 0
    %333 = vmatprep.subr.mxu0 0.0
    %334 = vmatpush1.msra.mxu0 0.0
    %335 = vmatprep.subr.mxu0 0.0
    %336 = vmatpush1.msra.mxu0 0.0
    %337 = vmatprep.subr.mxu0 0.0
    %338 = vmatpush1.msra.mxu0 0.0
    %339 = vmatprep.subr.mxu0 0.0
    %340 = vmatpush1.msra.mxu0 0.0
    %341 = vmatprep.subr.mxu0 0.0
    %342 = vmatpush1.msra.mxu0 0.0
    %343 = vmatprep.subr.mxu0 0.0
    %344 = vmatpush1.msra.mxu0 0.0
    %345 = vmatprep.subr.mxu0 0.0
    %346 = vmatpush1.msra.mxu0 0.0
    %347 = vmatprep.subr.mxu0 0.0
    %348 = vmatpush1.msra.mxu0 0.0
    %349 = vmatprep.subr.mxu0 0.0
    %350 = vmatpush1.msra.mxu0 0.0
    %351 = vmatprep.subr.mxu0 0.0
    %352 = vmatpush1.msra.mxu0 0.0
    %353 = vmatprep.subr.mxu0 0.0
    %354 = vmatpush1.msra.mxu0 %v216
    %355 = vmatprep.subr.mxu0 0.0
    %356 = vmatpush1.msra.mxu0 %v211
    %357 = vmatprep.subr.mxu0 0.0
    %358 = vmatpush1.msra.mxu0 %v232
    %359 = vmatprep.subr.mxu0 0.0
    %360 = vmatpush1.msra.mxu0 %v230
    %361 = vmatprep.subr.mxu0 0.0
    %362 = vmatpush1.msra.mxu0 %v142
    %363 = vmatprep.subr.mxu0 0.0
    %364 = vmatpush1.msra.mxu0 %v136
    %365 = vmatprep.subr.mxu0 0.0
    %366 = vmatpush2.msra.mxu0 0.0
    %367 = vmatprep.subr.mxu0 0.0
    %368 = vmatpush2.msra.mxu0 0.0
    %369 = vmatprep.subr.mxu0 0.0
    %370 = vmatpush2.msra.mxu0 0.0
    %371 = vmatprep.subr.mxu0 0.0
    %372 = vmatpush2.msra.mxu0 0.0
    %373 = vmatprep.subr.mxu0 0.0
    %374 = vmatpush2.msra.mxu0 0.0
    %375 = vmatprep.subr.mxu0 0.0
    %376 = vmatpush2.msra.mxu0 0.0
    %377 = vmatprep.subr.mxu0 0.0
    %378 = vmatpush2.msra.mxu0 0.0
    %379 = vmatprep.subr.mxu0 0.0
    %380 = vmatpush2.msra.mxu0 0.0
    %381 = vmatprep.subr.mxu0 0.0
    %382 = vmatpush2.msra.mxu0 0.0
    %383 = vmatprep.subr.mxu0 0.0
    %384 = vmatpush2.msra.mxu0 0.0
    %385 = vmatprep.subr.mxu0 0.0
    %386 = vmatpush2.msra.mxu0 0.0
    %387 = vmatprep.subr.mxu0 0.0
    %388 = vmatpush2.msra.mxu0 0.0
    %389 = vmatprep.subr.mxu0 0.0
    %390 = vmatpush2.msra.mxu0 0.0
    %391 = vmatprep.subr.mxu0 0.0
    %392 = vmatpush2.msra.mxu0 0.0
    %393 = vmatprep.subr.mxu0 0.0
    %394 = vmatpush2.msra.mxu0 0.0
    %395 = vmatprep.subr.mxu0 0.0
    %396 = vmatpush2.msra.mxu0 0.0
    %397 = vmatprep.mubr.f32.mxu0 0.0
    %398 = vmatmul.mubr.f32.gmra.mxu0 %v329
    %v399 = vpop.f32.mrf.mxu0
    %v400 = vadd.f32 %v323, %v399
    %v401 = vpop.f32.mrf.mxu0
    %402 = vmatprep.mubr.f32.mxu0 0.0
    %403 = vmatmul.mubr.f32.gmra.mxu0 %v331
    %v404 = vpop.f32.mrf.mxu0
    %v405 = vadd.f32 %v323, %v404
    %v406 = vpop.f32.mrf.mxu0
    %407 = vdwg.mxu0
    %v408 = vmax.f32 %v400, 0.0
    %v409 = vmax.f32 %v405, 0.0
    %vm410 = vcmask 523264
    %v412 = vsel %vm410, %v318, 0
    %v415 = vsel %vm410, %v319, 0
    %417 = vmatprep.subr.mxu0 0.0
    %418 = vmatpush1.msra.mxu0 0.0
    %419 = vmatprep.subr.mxu0 0.0
    %420 = vmatpush1.msra.mxu0 0.0
    %421 = vmatprep.subr.mxu0 0.0
    %422 = vmatpush1.msra.mxu0 0.0
    %423 = vmatprep.subr.mxu0 0.0
    %424 = vmatpush1.msra.mxu0 0.0
    %425 = vmatprep.subr.mxu0 0.0
    %426 = vmatpush1.msra.mxu0 0.0
    %427 = vmatprep.subr.mxu0 0.0
    %428 = vmatpush1.msra.mxu0 0.0
    %429 = vmatprep.subr.mxu0 0.0
    %430 = vmatpush1.msra.mxu0 0.0
    %431 = vmatprep.subr.mxu0 0.0
    %432 = vmatpush1.msra.mxu0 0.0
    %433 = vmatprep.subr.mxu0 0.0
    %434 = vmatpush1.msra.mxu0 %v38
    %435 = vmatprep.subr.mxu0 0.0
    %436 = vmatpush1.msra.mxu0 %v37
    %437 = vmatprep.subr.mxu0 0.0
    %438 = vmatpush1.msra.mxu0 %v36
    %439 = vmatprep.subr.mxu0 0.0
    %440 = vmatpush1.msra.mxu0 %v35
    %441 = vmatprep.subr.mxu0 0.0
    %442 = vmatpush1.msra.mxu0 %v34
    %443 = vmatprep.subr.mxu0 0.0
    %444 = vmatpush1.msra.mxu0 %v33
    %445 = vmatprep.subr.mxu0 0.0
    %446 = vmatpush1.msra.mxu0 %v32
    %447 = vmatprep.subr.mxu0 0.0
    %448 = vmatpush1.msra.mxu0 %v31
    %449 = vmatprep.subr.mxu0 0.0
    %450 = vmatpush2.msra.mxu0 0.0
    %451 = vmatprep.subr.mxu0 0.0
    %452 = vmatpush2.msra.mxu0 0.0
    %453 = vmatprep.subr.mxu0 0.0
    %454 = vmatpush2.msra.mxu0 0.0
    %455 = vmatprep.subr.mxu0 0.0
    %456 = vmatpush2.msra.mxu0 0.0
    %457 = vmatprep.subr.mxu0 0.0
    %458 = vmatpush2.msra.mxu0 0.0
    %459 = vmatprep.subr.mxu0 0.0
    %460 = vmatpush2.msra.mxu0 0.0
    %461 = vmatprep.subr.mxu0 0.0
    %462 = vmatpush2.msra.mxu0 0.0
    %463 = vmatprep.subr.mxu0 0.0
    %464 = vmatpush2.msra.mxu0 0.0
    %465 = vmatprep.subr.mxu0 0.0
    %466 = vmatpush2.msra.mxu0 0.0
    %467 = vmatprep.subr.mxu0 0.0
    %468 = vmatpush2.msra.mxu0 0.0
    %469 = vmatprep.subr.mxu0 0.0
    %470 = vmatpush2.msra.mxu0 0.0
    %471 = vmatprep.subr.mxu0 0.0
    %472 = vmatpush2.msra.mxu0 0.0
    %473 = vmatprep.subr.mxu0 0.0
    %474 = vmatpush2.msra.mxu0 0.0
    %475 = vmatprep.subr.mxu0 0.0
    %476 = vmatpush2.msra.mxu0 0.0
    %477 = vmatprep.subr.mxu0 0.0
    %478 = vmatpush2.msra.mxu0 0.0
    %479 = vmatprep.subr.mxu0 0.0
    %480 = vmatpush2.msra.mxu0 0.0
    %481 = vmatprep.mubr.f32.mxu0 0.0
    %482 = vmatmul.mubr.f32.gmra.mxu0 %v412
    %v483 = vpop.f32.mrf.mxu0
    %v484 = vadd.f32 0.0, %v483
    %v485 = vpop.f32.mrf.mxu0
    %486 = vmatprep.mubr.f32.mxu0 0.0
    %487 = vmatmul.mubr.f32.gmra.mxu0 %v415
    %v488 = vpop.f32.mrf.mxu0
    %v489 = vadd.f32 0.0, %v488
    %v490 = vpop.f32.mrf.mxu0
    %491 = vdwg.mxu0
    %v493 = vsel %vm410, %v408, 0
    %v496 = vsel %vm410, %v409, 0
    %498 = vmatprep.subr.mxu0 0.0
    %499 = vmatpush1.msra.mxu0 0.0
    %500 = vmatprep.subr.mxu0 0.0
    %501 = vmatpush1.msra.mxu0 0.0
    %502 = vmatprep.subr.mxu0 0.0
    %503 = vmatpush1.msra.mxu0 0.0
    %504 = vmatprep.subr.mxu0 0.0
    %505 = vmatpush1.msra.mxu0 0.0
    %506 = vmatprep.subr.mxu0 0.0
    %507 = vmatpush1.msra.mxu0 0.0
    %508 = vmatprep.subr.mxu0 0.0
    %509 = vmatpush1.msra.mxu0 0.0
    %510 = vmatprep.subr.mxu0 0.0
    %511 = vmatpush1.msra.mxu0 0.0
    %512 = vmatprep.subr.mxu0 0.0
    %513 = vmatpush1.msra.mxu0 0.0
    %514 = vmatprep.subr.mxu0 0.0
    %515 = vmatpush1.msra.mxu0 %v46
    %516 = vmatprep.subr.mxu0 0.0
    %517 = vmatpush1.msra.mxu0 %v45
    %518 = vmatprep.subr.mxu0 0.0
    %519 = vmatpush1.msra.mxu0 %v44
    %520 = vmatprep.subr.mxu0 0.0
    %521 = vmatpush1.msra.mxu0 %v43
    %522 = vmatprep.subr.mxu0 0.0
    %523 = vmatpush1.msra.mxu0 %v42
    %524 = vmatprep.subr.mxu0 0.0
    %525 = vmatpush1.msra.mxu0 %v41
    %526 = vmatprep.subr.mxu0 0.0
    %527 = vmatpush1.msra.mxu0 %v40
    %528 = vmatprep.subr.mxu0 0.0
    %529 = vmatpush1.msra.mxu0 %v39
    %530 = vmatprep.subr.mxu0 0.0
    %531 = vmatpush2.msra.mxu0 0.0
    %532 = vmatprep.subr.mxu0 0.0
    %533 = vmatpush2.msra.mxu0 0.0
    %534 = vmatprep.subr.mxu0 0.0
    %535 = vmatpush2.msra.mxu0 0.0
    %536 = vmatprep.subr.mxu0 0.0
    %537 = vmatpush2.msra.mxu0 0.0
    %538 = vmatprep.subr.mxu0 0.0
    %539 = vmatpush2.msra.mxu0 0.0
    %540 = vmatprep.subr.mxu0 0.0
    %541 = vmatpush2.msra.mxu0 0.0
    %542 = vmatprep.subr.mxu0 0.0
    %543 = vmatpush2.msra.mxu0 0.0
    %544 = vmatprep.subr.mxu0 0.0
    %545 = vmatpush2.msra.mxu0 0.0
    %546 = vmatprep.subr.mxu0 0.0
    %547 = vmatpush2.msra.mxu0 0.0
    %548 = vmatprep.subr.mxu0 0.0
    %549 = vmatpush2.msra.mxu0 0.0
    %550 = vmatprep.subr.mxu0 0.0
    %551 = vmatpush2.msra.mxu0 0.0
    %552 = vmatprep.subr.mxu0 0.0
    %553 = vmatpush2.msra.mxu0 0.0
    %554 = vmatprep.subr.mxu0 0.0
    %555 = vmatpush2.msra.mxu0 0.0
    %556 = vmatprep.subr.mxu0 0.0
    %557 = vmatpush2.msra.mxu0 0.0
    %558 = vmatprep.subr.mxu0 0.0
    %559 = vmatpush2.msra.mxu0 0.0
    %560 = vmatprep.subr.mxu0 0.0
    %561 = vmatpush2.msra.mxu0 0.0
    %562 = vmatprep.mubr.f32.mxu0 0.0
    %563 = vmatmul.mubr.f32.gmra.mxu0 %v493
    %v564 = vpop.f32.mrf.mxu0
    %v565 = vadd.f32 0.0, %v564
    %v566 = vpop.f32.mrf.mxu0
    %567 = vmatprep.mubr.f32.mxu0 0.0
    %568 = vmatmul.mubr.f32.gmra.mxu0 %v496
    %v569 = vpop.f32.mrf.mxu0
    %v570 = vadd.f32 0.0, %v569
    %v571 = vpop.f32.mrf.mxu0
    %572 = vdwg.mxu0
    %575 = vrot.lane.b32.xlu0 %v484, 96
    %v576 = vpop.permute.xlu0 %575
    %577 = vrot.lane.b32.xlu0 %v489, 96
    %v578 = vpop.permute.xlu0 %577
    %v581 = vlaneseq
    %v582 = vshrl.u32 %v581, 7
    %v583 = vsub.s32 2, %v582
    %v584 = vrot.slane %v55, %v583
    %585 = vmatprep.subr.mxu0 0.0
    %586 = vmatpush1.msra.mxu0 0.0
    %587 = vmatprep.subr.mxu0 0.0
    %588 = vmatpush1.msra.mxu0 0.0
    %589 = vmatprep.subr.mxu0 0.0
    %590 = vmatpush1.msra.mxu0 0.0
    %591 = vmatprep.subr.mxu0 0.0
    %592 = vmatpush1.msra.mxu0 0.0
    %593 = vmatprep.subr.mxu0 0.0
    %594 = vmatpush1.msra.mxu0 0.0
    %595 = vmatprep.subr.mxu0 0.0
    %596 = vmatpush1.msra.mxu0 0.0
    %597 = vmatprep.subr.mxu0 0.0
    %598 = vmatpush1.msra.mxu0 0.0
    %599 = vmatprep.subr.mxu0 0.0
    %600 = vmatpush1.msra.mxu0 0.0
    %601 = vmatprep.subr.mxu0 0.0
    %602 = vmatpush1.msra.mxu0 0.0
    %603 = vmatprep.subr.mxu0 0.0
    %604 = vmatpush1.msra.mxu0 0.0
    %605 = vmatprep.subr.mxu0 0.0
    %606 = vmatpush1.msra.mxu0 0.0
    %607 = vmatprep.subr.mxu0 0.0
    %608 = vmatpush1.msra.mxu0 0.0
    %609 = vmatprep.subr.mxu0 0.0
    %610 = vmatpush1.msra.mxu0 %v578
    %611 = vmatprep.subr.mxu0 0.0
    %612 = vmatpush1.msra.mxu0 %v576
    %613 = vmatprep.subr.mxu0 0.0
    %614 = vmatpush1.msra.mxu0 %v489
    %615 = vmatprep.subr.mxu0 0.0
    %616 = vmatpush1.msra.mxu0 %v484
    %617 = vmatprep.subr.mxu0 0.0
    %618 = vmatpush2.msra.mxu0 0.0
    %619 = vmatprep.subr.mxu0 0.0
    %620 = vmatpush2.msra.mxu0 0.0
    %621 = vmatprep.subr.mxu0 0.0
    %622 = vmatpush2.msra.mxu0 0.0
    %623 = vmatprep.subr.mxu0 0.0
    %624 = vmatpush2.msra.mxu0 0.0
    %625 = vmatprep.subr.mxu0 0.0
    %626 = vmatpush2.msra.mxu0 0.0
    %627 = vmatprep.subr.mxu0 0.0
    %628 = vmatpush2.msra.mxu0 0.0
    %629 = vmatprep.subr.mxu0 0.0
    %630 = vmatpush2.msra.mxu0 0.0
    %631 = vmatprep.subr.mxu0 0.0
    %632 = vmatpush2.msra.mxu0 0.0
    %633 = vmatprep.subr.mxu0 0.0
    %634 = vmatpush2.msra.mxu0 0.0
    %635 = vmatprep.subr.mxu0 0.0
    %636 = vmatpush2.msra.mxu0 0.0
    %637 = vmatprep.subr.mxu0 0.0
    %638 = vmatpush2.msra.mxu0 0.0
    %639 = vmatprep.subr.mxu0 0.0
    %640 = vmatpush2.msra.mxu0 0.0
    %641 = vmatprep.subr.mxu0 0.0
    %642 = vmatpush2.msra.mxu0 0.0
    %643 = vmatprep.subr.mxu0 0.0
    %644 = vmatpush2.msra.mxu0 0.0
    %645 = vmatprep.subr.mxu0 0.0
    %646 = vmatpush2.msra.mxu0 0.0
    %647 = vmatprep.subr.mxu0 0.0
    %648 = vmatpush2.msra.mxu0 0.0
    %649 = vmatprep.mubr.f32.mxu0 0.0
    %650 = vmatmul.mubr.f32.gmra.mxu0 %v239
    %v651 = vpop.f32.mrf.mxu0
    %v652 = vadd.f32 %v584, %v651
    %v653 = vpop.f32.mrf.mxu0
    %654 = vmatprep.mubr.f32.mxu0 0.0
    %655 = vmatmul.mubr.f32.gmra.mxu0 %v241
    %v656 = vpop.f32.mrf.mxu0
    %v657 = vadd.f32 %v584, %v656
    %v658 = vpop.f32.mrf.mxu0
    %659 = vdwg.mxu0
    %662 = vrot.lane.b32.xlu0 %v565, 96
    %v663 = vpop.permute.xlu0 %662
    %664 = vrot.lane.b32.xlu0 %v570, 96
    %v665 = vpop.permute.xlu0 %664
    %668 = vrot.lane.b32.xlu0 %v565, 64
    %v669 = vpop.permute.xlu0 %668
    %670 = vrot.lane.b32.xlu0 %v570, 64
    %v671 = vpop.permute.xlu0 %670
    %v674 = vlaneseq
    %v675 = vshrl.u32 %v674, 7
    %v676 = vsub.s32 3, %v675
    %v677 = vrot.slane %v55, %v676
    %678 = vmatprep.subr.mxu0 0.0
    %679 = vmatpush1.msra.mxu0 0.0
    %680 = vmatprep.subr.mxu0 0.0
    %681 = vmatpush1.msra.mxu0 0.0
    %682 = vmatprep.subr.mxu0 0.0
    %683 = vmatpush1.msra.mxu0 0.0
    %684 = vmatprep.subr.mxu0 0.0
    %685 = vmatpush1.msra.mxu0 0.0
    %686 = vmatprep.subr.mxu0 0.0
    %687 = vmatpush1.msra.mxu0 0.0
    %688 = vmatprep.subr.mxu0 0.0
    %689 = vmatpush1.msra.mxu0 0.0
    %690 = vmatprep.subr.mxu0 0.0
    %691 = vmatpush1.msra.mxu0 0.0
    %692 = vmatprep.subr.mxu0 0.0
    %693 = vmatpush1.msra.mxu0 0.0
    %694 = vmatprep.subr.mxu0 0.0
    %695 = vmatpush1.msra.mxu0 0.0
    %696 = vmatprep.subr.mxu0 0.0
    %697 = vmatpush1.msra.mxu0 0.0
    %698 = vmatprep.subr.mxu0 0.0
    %699 = vmatpush1.msra.mxu0 %v671
    %700 = vmatprep.subr.mxu0 0.0
    %701 = vmatpush1.msra.mxu0 %v669
    %702 = vmatprep.subr.mxu0 0.0
    %703 = vmatpush1.msra.mxu0 %v665
    %704 = vmatprep.subr.mxu0 0.0
    %705 = vmatpush1.msra.mxu0 %v663
    %706 = vmatprep.subr.mxu0 0.0
    %707 = vmatpush1.msra.mxu0 %v570
    %708 = vmatprep.subr.mxu0 0.0
    %709 = vmatpush1.msra.mxu0 %v565
    %710 = vmatprep.subr.mxu0 0.0
    %711 = vmatpush2.msra.mxu0 0.0
    %712 = vmatprep.subr.mxu0 0.0
    %713 = vmatpush2.msra.mxu0 0.0
    %714 = vmatprep.subr.mxu0 0.0
    %715 = vmatpush2.msra.mxu0 0.0
    %716 = vmatprep.subr.mxu0 0.0
    %717 = vmatpush2.msra.mxu0 0.0
    %718 = vmatprep.subr.mxu0 0.0
    %719 = vmatpush2.msra.mxu0 0.0
    %720 = vmatprep.subr.mxu0 0.0
    %721 = vmatpush2.msra.mxu0 0.0
    %722 = vmatprep.subr.mxu0 0.0
    %723 = vmatpush2.msra.mxu0 0.0
    %724 = vmatprep.subr.mxu0 0.0
    %725 = vmatpush2.msra.mxu0 0.0
    %726 = vmatprep.subr.mxu0 0.0
    %727 = vmatpush2.msra.mxu0 0.0
    %728 = vmatprep.subr.mxu0 0.0
    %729 = vmatpush2.msra.mxu0 0.0
    %730 = vmatprep.subr.mxu0 0.0
    %731 = vmatpush2.msra.mxu0 0.0
    %732 = vmatprep.subr.mxu0 0.0
    %733 = vmatpush2.msra.mxu0 0.0
    %734 = vmatprep.subr.mxu0 0.0
    %735 = vmatpush2.msra.mxu0 0.0
    %736 = vmatprep.subr.mxu0 0.0
    %737 = vmatpush2.msra.mxu0 0.0
    %738 = vmatprep.subr.mxu0 0.0
    %739 = vmatpush2.msra.mxu0 0.0
    %740 = vmatprep.subr.mxu0 0.0
    %741 = vmatpush2.msra.mxu0 0.0
    %742 = vmatprep.mubr.f32.mxu0 0.0
    %743 = vmatmul.mubr.f32.gmra.mxu0 %v329
    %v744 = vpop.f32.mrf.mxu0
    %v745 = vadd.f32 %v677, %v744
    %v746 = vpop.f32.mrf.mxu0
    %747 = vmatprep.mubr.f32.mxu0 0.0
    %748 = vmatmul.mubr.f32.gmra.mxu0 %v331
    %v749 = vpop.f32.mrf.mxu0
    %v750 = vadd.f32 %v677, %v749
    %v751 = vpop.f32.mrf.mxu0
    %752 = vdwg.mxu0
    %755 = vrot.lane.b32.xlu0 %v745, 32
    %v756 = vpop.permute.xlu0 %755
    %757 = vrot.lane.b32.xlu0 %v750, 32
    %v758 = vpop.permute.xlu0 %757
    %v761 = vsel %vm62, %v652, %v756
    %v762 = vsel %vm62, %v657, %v758
    %763 = vst.msk [vmem:[%s3] sm:$0xff] %vm410, %v761
    %764 = vst.msk [vmem:[%s3 + $0x8] sm:$0xff] %vm410, %v762
    %v765 = vlaneseq
    %v766 = vshrl.u32 %v765, 7
    %v767 = vsub.s32 4, %v766
    %v768 = vrot.slane %v55, %v767
    %v770 = vsel %vm62, %v652, 0
    %v773 = vsel %vm62, %v657, 0
    %v775 = vsel %vm62, %v745, 0
    %v777 = vsel %vm62, %v750, 0
    %779 = vmatprep.subr.mxu0 0.0
    %780 = vmatpush1.msra.mxu0 0.0
    %781 = vmatprep.subr.mxu0 0.0
    %782 = vmatpush1.msra.mxu0 0.0
    %783 = vmatprep.subr.mxu0 0.0
    %784 = vmatpush1.msra.mxu0 0.0
    %785 = vmatprep.subr.mxu0 0.0
    %786 = vmatpush1.msra.mxu0 0.0
    %787 = vmatprep.subr.mxu0 0.0
    %788 = vmatpush1.msra.mxu0 0.0
    %789 = vmatprep.subr.mxu0 0.0
    %790 = vmatpush1.msra.mxu0 0.0
    %791 = vmatprep.subr.mxu0 0.0
    %792 = vmatpush1.msra.mxu0 0.0
    %793 = vmatprep.subr.mxu0 0.0
    %794 = vmatpush1.msra.mxu0 0.0
    %795 = vmatprep.subr.mxu0 0.0
    %796 = vmatpush1.msra.mxu0 0.0
    %797 = vmatprep.subr.mxu0 0.0
    %798 = vmatpush1.msra.mxu0 0.0
    %799 = vmatprep.subr.mxu0 0.0
    %800 = vmatpush1.msra.mxu0 0.0
    %801 = vmatprep.subr.mxu0 0.0
    %802 = vmatpush1.msra.mxu0 0.0
    %803 = vmatprep.subr.mxu0 0.0
    %804 = vmatpush1.msra.mxu0 %v50
    %805 = vmatprep.subr.mxu0 0.0
    %806 = vmatpush1.msra.mxu0 %v49
    %807 = vmatprep.subr.mxu0 0.0
    %808 = vmatpush1.msra.mxu0 %v48
    %809 = vmatprep.subr.mxu0 0.0
    %810 = vmatpush1.msra.mxu0 %v47
    %811 = vmatprep.subr.mxu0 0.0
    %812 = vmatpush2.msra.mxu0 0.0
    %813 = vmatprep.subr.mxu0 0.0
    %814 = vmatpush2.msra.mxu0 0.0
    %815 = vmatprep.subr.mxu0 0.0
    %816 = vmatpush2.msra.mxu0 0.0
    %817 = vmatprep.subr.mxu0 0.0
    %818 = vmatpush2.msra.mxu0 0.0
    %819 = vmatprep.subr.mxu0 0.0
    %820 = vmatpush2.msra.mxu0 0.0
    %821 = vmatprep.subr.mxu0 0.0
    %822 = vmatpush2.msra.mxu0 0.0
    %823 = vmatprep.subr.mxu0 0.0
    %824 = vmatpush2.msra.mxu0 0.0
    %825 = vmatprep.subr.mxu0 0.0
    %826 = vmatpush2.msra.mxu0 0.0
    %827 = vmatprep.subr.mxu0 0.0
    %828 = vmatpush2.msra.mxu0 0.0
    %829 = vmatprep.subr.mxu0 0.0
    %830 = vmatpush2.msra.mxu0 0.0
    %831 = vmatprep.subr.mxu0 0.0
    %832 = vmatpush2.msra.mxu0 0.0
    %833 = vmatprep.subr.mxu0 0.0
    %834 = vmatpush2.msra.mxu0 0.0
    %835 = vmatprep.subr.mxu0 0.0
    %836 = vmatpush2.msra.mxu0 0.0
    %837 = vmatprep.subr.mxu0 0.0
    %838 = vmatpush2.msra.mxu0 0.0
    %839 = vmatprep.subr.mxu0 0.0
    %840 = vmatpush2.msra.mxu0 0.0
    %841 = vmatprep.subr.mxu0 0.0
    %842 = vmatpush2.msra.mxu0 0.0
    %843 = vmatprep.mubr.f32.mxu0 0.0
    %844 = vmatmul.mubr.f32.gmra.mxu0 %v770
    %v845 = vpop.f32.mrf.mxu0
    %v846 = vadd.f32 %v768, %v845
    %v847 = vpop.f32.mrf.mxu0
    %848 = vmatprep.mubr.f32.mxu0 0.0
    %849 = vmatmul.mubr.f32.gmra.mxu0 %v773
    %v850 = vpop.f32.mrf.mxu0
    %v851 = vadd.f32 %v768, %v850
    %v852 = vpop.f32.mrf.mxu0
    %853 = vmatprep.mubr.f32.mxu0 0.0
    %854 = vmatmul.mubr.f32.gmra.mxu0 %v775
    %v855 = vpop.f32.mrf.mxu0
    %v856 = vadd.f32 %v768, %v855
    %v857 = vpop.f32.mrf.mxu0
    %858 = vmatprep.mubr.f32.mxu0 0.0
    %859 = vmatmul.mubr.f32.gmra.mxu0 %v777
    %v860 = vpop.f32.mrf.mxu0
    %v861 = vadd.f32 %v768, %v860
    %v862 = vpop.f32.mrf.mxu0
    %863 = vdwg.mxu0
    %vm864 = vcmp.gt.f32.partialorder %v846, 0.0
    %vm865 = vcmp.gt.f32.partialorder %v851, 0.0
    %vm866 = vcmp.gt.f32.partialorder %v856, 0.0
    %vm867 = vcmp.gt.f32.partialorder %v861, 0.0
    %v868 = vmin.f32 %v846, 0.0
    %v869 = vmin.f32 %v851, 0.0
    %v870 = vmin.f32 %v856, 0.0
    %v871 = vmin.f32 %v861, 0.0
    %v872 = vmul.f32 %v868, 1.442695
    %v873 = vpow.pop %v872
    %v874 = vmul.f32 %v869, 1.442695
    %v875 = vpow.pop %v874
    %v876 = vmul.f32 %v870, 1.442695
    %v877 = vpow.pop %v876
    %v878 = vmul.f32 %v871, 1.442695
    %v879 = vpow.pop %v878
    %v880 = vsub.f32 %v873, 1.0
    %v881 = vsub.f32 %v875, 1.0
    %v882 = vsub.f32 %v877, 1.0
    %v883 = vsub.f32 %v879, 1.0
    %v884 = vsel %vm864, %v846, %v880
    %v885 = vsel %vm865, %v851, %v881
    %v886 = vsel %vm866, %v856, %v882
    %v887 = vsel %vm867, %v861, %v883
    %v888 = vlaneseq
    %v889 = vshrl.u32 %v888, 7
    %v890 = vsub.s32 5, %v889
    %v891 = vrot.slane %v55, %v890
    %v893 = vsel %vm62, %v884, 0
    %v896 = vsel %vm62, %v885, 0
    %v899 = vsel %vm62, %v886, 0
    %v902 = vsel %vm62, %v887, 0
    %904 = vmatprep.subr.mxu0 0.0
    %905 = vmatpush1.msra.mxu0 0.0
    %906 = vmatprep.subr.mxu0 0.0
    %907 = vmatpush1.msra.mxu0 0.0
    %908 = vmatprep.subr.mxu0 0.0
    %909 = vmatpush1.msra.mxu0 0.0
    %910 = vmatprep.subr.mxu0 0.0
    %911 = vmatpush1.msra.mxu0 0.0
    %912 = vmatprep.subr.mxu0 0.0
    %913 = vmatpush1.msra.mxu0 0.0
    %914 = vmatprep.subr.mxu0 0.0
    %915 = vmatpush1.msra.mxu0 0.0
    %916 = vmatprep.subr.mxu0 0.0
    %917 = vmatpush1.msra.mxu0 0.0
    %918 = vmatprep.subr.mxu0 0.0
    %919 = vmatpush1.msra.mxu0 0.0
    %920 = vmatprep.subr.mxu0 0.0
    %921 = vmatpush1.msra.mxu0 0.0
    %922 = vmatprep.subr.mxu0 0.0
    %923 = vmatpush1.msra.mxu0 0.0
    %924 = vmatprep.subr.mxu0 0.0
    %925 = vmatpush1.msra.mxu0 0.0
    %926 = vmatprep.subr.mxu0 0.0
    %927 = vmatpush1.msra.mxu0 0.0
    %928 = vmatprep.subr.mxu0 0.0
    %929 = vmatpush1.msra.mxu0 %v54
    %930 = vmatprep.subr.mxu0 0.0
    %931 = vmatpush1.msra.mxu0 %v53
    %932 = vmatprep.subr.mxu0 0.0
    %933 = vmatpush1.msra.mxu0 %v52
    %934 = vmatprep.subr.mxu0 0.0
    %935 = vmatpush1.msra.mxu0 %v51
    %936 = vmatprep.subr.mxu0 0.0
    %937 = vmatpush2.msra.mxu0 0.0
    %938 = vmatprep.subr.mxu0 0.0
    %939 = vmatpush2.msra.mxu0 0.0
    %940 = vmatprep.subr.mxu0 0.0
    %941 = vmatpush2.msra.mxu0 0.0
    %942 = vmatprep.subr.mxu0 0.0
    %943 = vmatpush2.msra.mxu0 0.0
    %944 = vmatprep.subr.mxu0 0.0
    %945 = vmatpush2.msra.mxu0 0.0
    %946 = vmatprep.subr.mxu0 0.0
    %947 = vmatpush2.msra.mxu0 0.0
    %948 = vmatprep.subr.mxu0 0.0
    %949 = vmatpush2.msra.mxu0 0.0
    %950 = vmatprep.subr.mxu0 0.0
    %951 = vmatpush2.msra.mxu0 0.0
    %952 = vmatprep.subr.mxu0 0.0
    %953 = vmatpush2.msra.mxu0 0.0
    %954 = vmatprep.subr.mxu0 0.0
    %955 = vmatpush2.msra.mxu0 0.0
    %956 = vmatprep.subr.mxu0 0.0
    %957 = vmatpush2.msra.mxu0 0.0
    %958 = vmatprep.subr.mxu0 0.0
    %959 = vmatpush2.msra.mxu0 0.0
    %960 = vmatprep.subr.mxu0 0.0
    %961 = vmatpush2.msra.mxu0 0.0
    %962 = vmatprep.subr.mxu0 0.0
    %963 = vmatpush2.msra.mxu0 0.0
    %964 = vmatprep.subr.mxu0 0.0
    %965 = vmatpush2.msra.mxu0 0.0
    %966 = vmatprep.subr.mxu0 0.0
    %967 = vmatpush2.msra.mxu0 0.0
    %968 = vmatprep.mubr.f32.mxu0 0.0
    %969 = vmatmul.mubr.f32.gmra.mxu0 %v893
    %v970 = vpop.f32.mrf.mxu0
    %v971 = vadd.f32 %v891, %v970
    %v972 = vpop.f32.mrf.mxu0
    %973 = vmatprep.mubr.f32.mxu0 0.0
    %974 = vmatmul.mubr.f32.gmra.mxu0 %v896
    %v975 = vpop.f32.mrf.mxu0
    %v976 = vadd.f32 %v891, %v975
    %v977 = vpop.f32.mrf.mxu0
    %978 = vmatprep.mubr.f32.mxu0 0.0
    %979 = vmatmul.mubr.f32.gmra.mxu0 %v899
    %v980 = vpop.f32.mrf.mxu0
    %v981 = vadd.f32 %v891, %v980
    %v982 = vpop.f32.mrf.mxu0
    %983 = vmatprep.mubr.f32.mxu0 0.0
    %984 = vmatmul.mubr.f32.gmra.mxu0 %v902
    %v985 = vpop.f32.mrf.mxu0
    %v986 = vadd.f32 %v891, %v985
    %v987 = vpop.f32.mrf.mxu0
    %988 = vdwg.mxu0
    %v989 = vmul.f32 %v971, %v971
    %v990 = vmul.f32 %v976, %v976
    %v991 = vmul.f32 %v981, %v981
    %v992 = vmul.f32 %v986, %v986
    %v993 = vsel %vm62, %v989, 0.0
    %994 = vadd.xlane.f32.xlu0 %v993
    %v995 = vpop.xlane.xlu0 %994
    %v996 = vsel %vm62, %v990, 0.0
    %997 = vadd.xlane.f32.xlu0 %v996
    %v998 = vpop.xlane.xlu0 %997
    %v999 = vsel %vm62, %v991, 0.0
    %1000 = vadd.xlane.f32.xlu0 %v999
    %v1001 = vpop.xlane.xlu0 %1000
    %v1002 = vsel %vm62, %v992, 0.0
    %1003 = vadd.xlane.f32.xlu0 %v1002
    %v1004 = vpop.xlane.xlu0 %1003
    %v1005 = vrsqrt.pop %v995
    %v1006 = vrsqrt.pop %v998
    %v1007 = vrsqrt.pop %v1001
    %v1008 = vrsqrt.pop %v1004
    %v1009 = vmul.f32 %v971, %v1005
    %v1010 = vmul.f32 %v976, %v1006
    %v1011 = vmul.f32 %v981, %v1007
    %v1012 = vmul.f32 %v986, %v1008
    %v1013 = vmul.f32 %v1009, 1.25
    %v1014 = vmul.f32 %v1010, 1.25
    %v1016 = vsel %vm62, %v1013, 0
    %v1019 = vsel %vm62, %v1014, 0
    %v1022 = vsel %vm62, %v1011, 0
    %v1025 = vsel %vm62, %v1012, 0
    %1027 = vmatprep.subr.mxu0 0.0
    %1028 = vmatpush1.xpose.msra.mxu0 0.0
    %1029 = vmatprep.subr.mxu0 0.0
    %1030 = vmatpush1.xpose.msra.mxu0 0.0
    %1031 = vmatprep.subr.mxu0 0.0
    %1032 = vmatpush1.xpose.msra.mxu0 0.0
    %1033 = vmatprep.subr.mxu0 0.0
    %1034 = vmatpush1.xpose.msra.mxu0 0.0
    %1035 = vmatprep.subr.mxu0 0.0
    %1036 = vmatpush1.xpose.msra.mxu0 0.0
    %1037 = vmatprep.subr.mxu0 0.0
    %1038 = vmatpush1.xpose.msra.mxu0 0.0
    %1039 = vmatprep.subr.mxu0 0.0
    %1040 = vmatpush1.xpose.msra.mxu0 0.0
    %1041 = vmatprep.subr.mxu0 0.0
    %1042 = vmatpush1.xpose.msra.mxu0 0.0
    %1043 = vmatprep.subr.mxu0 0.0
    %1044 = vmatpush1.xpose.msra.mxu0 0.0
    %1045 = vmatprep.subr.mxu0 0.0
    %1046 = vmatpush1.xpose.msra.mxu0 0.0
    %1047 = vmatprep.subr.mxu0 0.0
    %1048 = vmatpush1.xpose.msra.mxu0 0.0
    %1049 = vmatprep.subr.mxu0 0.0
    %1050 = vmatpush1.xpose.msra.mxu0 0.0
    %1051 = vmatprep.subr.mxu0 0.0
    %1052 = vmatpush1.xpose.msra.mxu0 0.0
    %1053 = vmatprep.subr.mxu0 0.0
    %1054 = vmatpush1.xpose.msra.mxu0 0.0
    %1055 = vmatprep.subr.mxu0 0.0
    %1056 = vmatpush1.xpose.msra.mxu0 %v1025
    %1057 = vmatprep.subr.mxu0 0.0
    %1058 = vmatpush1.xpose.msra.mxu0 %v1022
    %1059 = vmatprep.subr.mxu0 0.0
    %1060 = vmatpush2.xpose.msra.mxu0 0.0
    %1061 = vmatprep.subr.mxu0 0.0
    %1062 = vmatpush2.xpose.msra.mxu0 0.0
    %1063 = vmatprep.subr.mxu0 0.0
    %1064 = vmatpush2.xpose.msra.mxu0 0.0
    %1065 = vmatprep.subr.mxu0 0.0
    %1066 = vmatpush2.xpose.msra.mxu0 0.0
    %1067 = vmatprep.subr.mxu0 0.0
    %1068 = vmatpush2.xpose.msra.mxu0 0.0
    %1069 = vmatprep.subr.mxu0 0.0
    %1070 = vmatpush2.xpose.msra.mxu0 0.0
    %1071 = vmatprep.subr.mxu0 0.0
    %1072 = vmatpush2.xpose.msra.mxu0 0.0
    %1073 = vmatprep.subr.mxu0 0.0
    %1074 = vmatpush2.xpose.msra.mxu0 0.0
    %1075 = vmatprep.subr.mxu0 0.0
    %1076 = vmatpush2.xpose.msra.mxu0 0.0
    %1077 = vmatprep.subr.mxu0 0.0
    %1078 = vmatpush2.xpose.msra.mxu0 0.0
    %1079 = vmatprep.subr.mxu0 0.0
    %1080 = vmatpush2.xpose.msra.mxu0 0.0
    %1081 = vmatprep.subr.mxu0 0.0
    %1082 = vmatpush2.xpose.msra.mxu0 0.0
    %1083 = vmatprep.subr.mxu0 0.0
    %1084 = vmatpush2.xpose.msra.mxu0 0.0
    %1085 = vmatprep.subr.mxu0 0.0
    %1086 = vmatpush2.xpose.msra.mxu0 0.0
    %1087 = vmatprep.subr.mxu0 0.0
    %1088 = vmatpush2.xpose.msra.mxu0 0.0
    %1089 = vmatprep.subr.mxu0 0.0
    %1090 = vmatpush2.xpose.msra.mxu0 0.0
    %1091 = vmatprep.mubr.f32.mxu0 0.0
    %1092 = vmatmul.mubr.f32.gmra.mxu0 %v1016
    %v1093 = vpop.f32.mrf.mxu0
    %v1094 = vadd.f32 0.0, %v1093
    %v1095 = vpop.f32.mrf.mxu0
    %1096 = vmatprep.mubr.f32.mxu0 0.0
    %1097 = vmatmul.mubr.f32.gmra.mxu0 %v1019
    %v1098 = vpop.f32.mrf.mxu0
    %v1099 = vadd.f32 0.0, %v1098
    %v1100 = vpop.f32.mrf.mxu0
    %1101 = vdwg.mxu0
    %v1102 = vmul.f32 %v1094, 1.442695
    %v1103 = vpow.pop %v1102
    %v1104 = vmul.f32 %v1099, 1.442695
    %v1105 = vpow.pop %v1104
    %v1106 = vld [vmem:[%s2] sm:$0xff]
    %v1107 = vld [vmem:[%s2 + $0x8] sm:$0xff]
    %vm1108 = vcmask 130048
    %v1109 = vsel %vm1108, %v1103, 0.0
    %1110 = vadd.xlane.f32.xlu0 %v1109
    %v1111 = vpop.xlane.xlu0 %1110
    %v1112 = vsel %vm1108, %v1105, 0.0
    %1113 = vadd.xlane.f32.xlu0 %v1112
    %v1114 = vpop.xlane.xlu0 %1113
    %v1115 = vadd.f32 %v1111, 1e-08
    %v1116 = vadd.f32 %v1114, 1e-08
    %v1117 = vmul.f32 %v1103, %v1106
    %v1118 = vmul.f32 %v1105, %v1107
    %v1119 = vsel %vm1108, %v1117, 0.0
    %1120 = vadd.xlane.f32.xlu0 %v1119
    %v1121 = vpop.xlane.xlu0 %1120
    %v1122 = vsel %vm1108, %v1118, 0.0
    %1123 = vadd.xlane.f32.xlu0 %v1122
    %v1124 = vpop.xlane.xlu0 %1123
    %v1125 = vlog2.pop %v1115
    %v1126 = vmul.f32 %v1125, 0.6931472
    %v1127 = vlog2.pop %v1116
    %v1128 = vmul.f32 %v1127, 0.6931472
    %v1129 = vlog2.pop %v1121
    %v1130 = vmul.f32 %v1129, 0.6931472
    %v1131 = vlog2.pop %v1124
    %v1132 = vmul.f32 %v1131, 0.6931472
    %v1133 = vsub.f32 %v1126, %v1130
    %v1134 = vsub.f32 %v1128, %v1132
    %v1135 = vadd.f32 %v1109, %v1112
    %v1136 = vrot.slane %v1135, 4
    %v1137 = vadd.f32 %v1135, %v1136
    %v1138 = vrot.slane %v1137, 2
    %v1139 = vadd.f32 %v1137, %v1138
    %v1140 = vrot.slane %v1139, 1
    %v1141 = vadd.f32 %v1139, %v1140
    %v1142 = vadd.f32 %v1141, 1e-08
    %1145 = vrot.lane.b32.xlu0 %v1106, 112
    %v1146 = vpop.permute.xlu0 %1145
    %1147 = vrot.lane.b32.xlu0 %v1107, 112
    %v1148 = vpop.permute.xlu0 %1147
    %v1151 = vmul.f32 %v1103, %v1146
    %v1152 = vmul.f32 %v1105, %v1148
    %v1153 = vsel %vm1108, %v1151, 0.0
    %v1154 = vsel %vm1108, %v1152, 0.0
    %v1155 = vadd.f32 %v1153, %v1154
    %v1156 = vrot.slane %v1155, 4
    %v1157 = vadd.f32 %v1155, %v1156
    %v1158 = vrot.slane %v1157, 2
    %v1159 = vadd.f32 %v1157, %v1158
    %v1160 = vrot.slane %v1159, 1
    %v1161 = vadd.f32 %v1159, %v1160
    %v1162 = vlog2.pop %v1142
    %v1163 = vmul.f32 %v1162, 0.6931472
    %v1164 = vlog2.pop %v1161
    %v1165 = vmul.f32 %v1164, 0.6931472
    %v1166 = vsub.f32 %v1163, %v1165
    %vm1167 = vcmask 7168
    %v1168 = vsel %vm1167, %v1133, 0.0
    %v1169 = vsel %vm1167, %v1134, 0.0
    %v1170 = vadd.f32 %v1168, %v1169
    %1171 = vadd.xlane.f32.xlu0 %v1170
    %v1172 = vpop.xlane.xlu0 %1171
    %v1173 = vrot.slane %v1172, 4
    %v1174 = vadd.f32 %v1172, %v1173
    %v1175 = vrot.slane %v1174, 2
    %v1176 = vadd.f32 %v1174, %v1175
    %v1177 = vrot.slane %v1176, 1
    %v1178 = vadd.f32 %v1176, %v1177
    %s1179 = vtos %v1178
    %v1180 = vrcp.pop 16.0
    %s1181 = vtos %v1180
    %s1182 = smul.f32 %s1179, %s1181
    %s1183 = smul.f32 %s1182, 0.5
    %vm1184 = vcmask 122880
    %v1185 = vsel %vm1184, %v1166, 0.0
    %1186 = vadd.xlane.f32.xlu0 %v1185
    %v1187 = vpop.xlane.xlu0 %1186
    %v1188 = vrot.slane %v1187, 4
    %v1189 = vadd.f32 %v1187, %v1188
    %v1190 = vrot.slane %v1189, 2
    %v1191 = vadd.f32 %v1189, %v1190
    %v1192 = vrot.slane %v1191, 1
    %v1193 = vadd.f32 %v1191, %v1192
    %s1194 = vtos %v1193
    %v1195 = vrcp.pop 16.0
    %s1196 = vtos %v1195
    %s1197 = smul.f32 %s1194, %s1196
    %s1198 = smul.f32 %s1197, 0.5
    %s1199 = sadd.f32 %s1183, %s1198
    %s1200 = scalar_lea.smem [#allocation2], 0
    %1201 = sst [smem:[%s1200]] %s1199
    // Predicated region
    $region14: #{existence_encoder_fwd.1} parent=1 // pred_check
      _
    $region15: #{existence_encoder_fwd.1} parent=1 // pred_check_branch
      %1203 = sbr.rel (0) target = $region17
    $region16: #{existence_encoder_fwd.1} parent=1 // pred_region
      _
    $region17: #{existence_encoder_fwd.1} parent=1 // pred_fallthru
      _
    // Predicated region
    $region18: #{existence_encoder_fwd.1} parent=1 // pred_check
      _
    $region19: #{existence_encoder_fwd.1} parent=1 // pred_check_branch
      %1205 = sbr.rel (0) target = $region21
    $region20: #{existence_encoder_fwd.1} parent=1 // pred_region
      %s1207 = ssub.s32 16, 16
      %1208 = vsyncadd [#allocation3], %s1207
      %1211 = dma.smem_to_hbm [#allocation2], 16, %s4, [#allocation3]
    $region21: #{existence_encoder_fwd.1} parent=1 // pred_fallthru
      _
    // Predicated region
    $region22: #{existence_encoder_fwd.1} parent=1 // pred_check
      _
    $region23: #{existence_encoder_fwd.1} parent=1 // pred_check_branch
      %1213 = sbr.rel (0) target = $region25
    $region24: #{existence_encoder_fwd.1} parent=1 // pred_region
      _
    $region25: #{existence_encoder_fwd.1} parent=1 // pred_fallthru
      _
    // Predicated region
    $region26: #{existence_encoder_fwd.1} parent=1 // pred_check
      _
    $region27: #{existence_encoder_fwd.1} parent=1 // pred_check_branch
      %1215 = sbr.rel (0) target = $region29
    $region28: #{existence_encoder_fwd.1} parent=1 // pred_region
      %1216 = dma.done [#allocation3], 16
    $region29: #{existence_encoder_fwd.1} parent=1 // pred_fallthru
      _
    %1217 = sfence
    %1218 = vsyncpa [#allocation3], 1

</llo_original>
